<compile_context>
chip_gen: v7x
topology: tpu7x:2x2x1
jax: 0.10.0
libtpu: 0.0.40
codegen_flags: <defaults>
</compile_context>

<pallas_src>
import functools

import jax
import jax.numpy as jnp
from jax.experimental import pallas as pl
from jax.experimental.pallas import tpu as pltpu


def _sage_conv_kernel(adj_ref, feat_ref, self_ref, invdeg_ref,
                      wl_ref, b_ref, wr_ref, out_ref, acc_ref, *,
                      activation, num_valid_out):
    """One (row_tile, k_tile) grid step of SAGEConv:
       out = act( W_l @ mean_nbr(feat) + b + W_r @ self )."""
    k = pl.program_id(1)

    @pl.when(k == 0)
    def _():
        acc_ref[...] = jnp.zeros_like(acc_ref)

    # Partial neighbour sum for this K block.  A is int8 {0,1}; casting it to
    # the feature dtype (bf16) is exact (VPU), the matmul runs on the MXU with
    # f32 accumulation.
    acc_ref[...] += jnp.dot(adj_ref[...].astype(feat_ref.dtype), feat_ref[...],
                            preferred_element_type=jnp.float32)

    @pl.when(k == pl.num_programs(1) - 1)
    def _():
        agg = acc_ref[...] * invdeg_ref[...]            # mean = sum * (1/deg), f32
        out = (jnp.dot(agg.astype(wl_ref.dtype), wl_ref[...],
                       preferred_element_type=jnp.float32)
               + b_ref[...]
               + jnp.dot(self_ref[...], wr_ref[...],
                         preferred_element_type=jnp.float32))
        if activation == "relu":
            out_ref[...] = jnp.maximum(out, 0.0).astype(out_ref.dtype)
        else:
            # masked log_softmax over the valid class lanes (mask const is
            # f32-safe; logits stay f32 throughout).
            lane = jax.lax.broadcasted_iota(jnp.int32, out.shape, 1)
            out = jnp.where(lane < num_valid_out, out, -1e30)
            m = jnp.max(out, axis=1, keepdims=True)
            shifted = out - m
            lse = jnp.log(jnp.sum(jnp.exp(shifted), axis=1, keepdims=True))
            out_ref[...] = (shifted - lse).astype(out_ref.dtype)


def _sage_conv(adj_i8, feat, self_feat, inv_deg, wl, b, wr, *,
               row_tile, k_tile, out_dtype, activation, num_valid_out,
               vmem_limit_bytes):
    """Fused SAGEConv (+activation) pallas_call with a K-tiled aggregation."""
    n_pad = adj_i8.shape[0]
    feat_pad = feat.shape[1]
    out_pad = wl.shape[1]
    grid = (n_pad // row_tile, n_pad // k_tile)

    kernel = functools.partial(_sage_conv_kernel, activation=activation,
                               num_valid_out=num_valid_out)

    return pl.pallas_call(
        kernel,
        out_shape=jax.ShapeDtypeStruct((n_pad, out_pad), out_dtype),
        grid=grid,
        in_specs=[
            pl.BlockSpec((row_tile, k_tile), lambda i, k: (i, k)),    # A tile (int8)
            pl.BlockSpec((k_tile, feat_pad), lambda i, k: (k, 0)),    # streamed features
            pl.BlockSpec((row_tile, feat_pad), lambda i, k: (i, 0)),  # self-term rows
            pl.BlockSpec((row_tile, 1), lambda i, k: (i, 0)),         # 1/deg per row (f32)
            pl.BlockSpec((feat_pad, out_pad), lambda i, k: (0, 0)),   # W_l (pre-transposed)
            pl.BlockSpec((1, out_pad), lambda i, k: (0, 0)),          # bias (f32)
            pl.BlockSpec((feat_pad, out_pad), lambda i, k: (0, 0)),   # W_r (pre-transposed)
        ],
        out_specs=pl.BlockSpec((row_tile, out_pad), lambda i, k: (i, 0)),
        scratch_shapes=[pltpu.VMEM((row_tile, feat_pad), jnp.float32)],
        compiler_params=pltpu.CompilerParams(
            dimension_semantics=("parallel", "arbitrary"),
            vmem_limit_bytes=vmem_limit_bytes),
    )(adj_i8, feat, self_feat, inv_deg, wl, b, wr)


def _round_up(v, m):
    return (v + m - 1) // m * m


def _choose_tiles(n, *, max_row_tile=256, max_k_tile=1024):
    """Row tile (M) and contraction tile (K), both multiples of 128.

    Keeps >= 4 row steps when N allows (amortizes the ~0.35 us per-step
    overhead and gives the v7x megacore >= 2 steps per core); the K tile is as
    large as the cap allows (big, regular aggregation DMAs) and is a multiple
    of row_tile so one padded N works for both axes.
    """
    row_tile = max_row_tile
    while row_tile > 128 and _round_up(n, row_tile) < 4 * row_tile:
        row_tile //= 2
    k_tile = min(max_k_tile, _round_up(n, row_tile))
    n_pad = _round_up(n, k_tile)
    return row_tile, k_tile, n_pad


def sage_forward(x, adj, params, *, max_row_tile=256, max_k_tile=1024):
    """x: [N, in_c] f32 node features; adj: [N, N] dense {0,1} adjacency
    (row i lists i's neighbours).  Mean aggregation == (adj @ x) / deg(i)."""
    (wl1, b1, wr1), (wl2, b2, wr2) = params
    n, in_c = x.shape
    hid = wl1.shape[1]
    out_c = wl2.shape[1]

    row_tile, k_tile, n_pad = _choose_tiles(n, max_row_tile=max_row_tile,
                                            max_k_tile=max_k_tile)
    in_pad = _round_up(in_c, 128)
    hid_pad = _round_up(hid, 128)
    out_pad = _round_up(out_c, 128)

    f32, bf16, i8 = jnp.float32, jnp.bfloat16, jnp.int8

    def pad2(a, rows, cols, dtype):
        return jnp.zeros((rows, cols), dtype).at[:a.shape[0], :a.shape[1]].set(
            a.astype(dtype))

    # int8 binary adjacency (dominant N^2 HBM stream at 1 B/elem) + f32 1/deg.
    # TODO(synk): sparse adj_t SpMM is not translated; dense form targets
    # small/medium graphs.
    adj_i8 = pad2(adj, n_pad, n_pad, i8)
    inv_deg = 1.0 / jnp.maximum(jnp.sum(adj, axis=1, keepdims=True), 1.0)
    inv_deg_p = pad2(inv_deg, n_pad, 1, f32)

    x_p = pad2(x, n_pad, in_pad, bf16)
    wl1_p = pad2(wl1, in_pad, hid_pad, bf16)
    wr1_p = pad2(wr1, in_pad, hid_pad, bf16)
    b1_p = pad2(b1.reshape(1, -1), 1, hid_pad, f32)
    wl2_p = pad2(wl2, hid_pad, out_pad, bf16)
    wr2_p = pad2(wr2, hid_pad, out_pad, bf16)
    b2_p = pad2(b2.reshape(1, -1), 1, out_pad, f32)

    # The K-tiled design needs only a few MiB of VMEM per call regardless of N;
    # 32 MiB gives ample headroom on every generation (v7x physical is 64 MiB).
    vmem_limit = 32 * 1024 * 1024

    # NOTE: when in_pad > hid_pad, layer 1 could be reassociated as
    # A @ (X @ W_l) so the O(N^2 * width) aggregation runs at the narrower
    # width; it is a no-op at the demo's 128/128 padded widths.

    # ---- layer 1: h = relu(SAGEConv1(x, A)) --------------------------------
    h = _sage_conv(adj_i8, x_p, x_p, inv_deg_p, wl1_p, b1_p, wr1_p,
                   row_tile=row_tile, k_tile=k_tile, out_dtype=bf16,
                   activation="relu", num_valid_out=hid,
                   vmem_limit_bytes=vmem_limit)

    # dropout between layers is identity in eval mode.
    # TODO(synk): training-mode dropout is not implemented.

    # ---- layer 2: log_softmax(SAGEConv2(h, A)) ------------------------------
    out_p = _sage_conv(adj_i8, h, h, inv_deg_p, wl2_p, b2_p, wr2_p,
                       row_tile=row_tile, k_tile=k_tile, out_dtype=f32,
                       activation="log_softmax", num_valid_out=out_c,
                       vmem_limit_bytes=vmem_limit)

    return out_p[:n, :out_c]


def init_params(key, in_c, hid, out_c):
    """torch.nn.Linear-style uniform init; weights stored pre-transposed [in, out]."""
    def linear(key, fan_in, fan_out, bias=True):
        kw, kb = jax.random.split(key)
        bound = 1.0 / float(fan_in) ** 0.5
        w_t = jax.random.uniform(kw, (fan_in, fan_out), jnp.float32,
                                 -bound, bound)
        b = (jax.random.uniform(kb, (fan_out,), jnp.float32, -bound, bound)
             if bias else None)
        return w_t, b

    k1, k2, k3, k4 = jax.random.split(key, 4)
    wl1, b1 = linear(k1, in_c, hid)                # lin_l of conv1 (with bias)
    wr1, _ = linear(k2, in_c, hid, bias=False)     # lin_r of conv1 (no bias)
    wl2, b2 = linear(k3, hid, out_c)               # lin_l of conv2 (with bias)
    wr2, _ = linear(k4, hid, out_c, bias=False)    # lin_r of conv2 (no bias)
    return (wl1, b1, wr1), (wl2, b2, wr2)


def sage_reference(x, adj, params):
    """Pure-JAX reference using the same bf16-operand / f32-accumulate math."""
    (wl1, b1, wr1), (wl2, b2, wr2) = params
    bf16 = jnp.bfloat16
    dot = lambda a, b: jnp.dot(a.astype(bf16), b.astype(bf16),
                               preferred_element_type=jnp.float32)
    inv_deg = 1.0 / jnp.maximum(jnp.sum(adj, axis=1, keepdims=True), 1.0)
    agg1 = dot(adj, x) * inv_deg
    h = jnp.maximum(dot(agg1, wl1) + b1 + dot(x, wr1), 0.0)
    hb = h.astype(bf16)
    agg2 = dot(adj, hb) * inv_deg
    logits = dot(agg2, wl2) + b2 + dot(hb, wr2)
    return jax.nn.log_softmax(logits, axis=1)


if __name__ == "__main__":
    # small demo shapes: N=512 nodes, in=32 features, hidden=64, 8 classes
    N, IN_C, HID, OUT_C = 512, 32, 64, 8

    key = jax.random.PRNGKey(0)
    ka, kx, kp = jax.random.split(key, 3)

    # deterministic random graph, dense binary adjacency (no self loops)
    adj = (jax.random.uniform(ka, (N, N)) < 8.0 / N).astype(jnp.float32)
    adj = adj * (1.0 - jnp.eye(N, dtype=jnp.float32))

    x = jax.random.normal(kx, (N, IN_C), dtype=jnp.float32)
    params = init_params(kp, IN_C, HID, OUT_C)

    out = sage_forward(x, adj, params)
    out = jax.block_until_ready(out)

    ref = sage_reference(x, adj, params)
    assert out.shape == (N, OUT_C)
    err = float(jnp.max(jnp.abs(out - ref)))
    assert err < 3e-2, err

    print("KERNEL_OK")
</pallas_src>

<mosaic_0001>
module attributes {stable_mosaic.version = 11 : i64} {
  func.func @_sage_conv_kernel(%arg0: i32, %arg1: i32, %arg2: memref<128x512xi8, #tpu.memory_space<vmem>>, %arg3: memref<512x128xbf16, #tpu.memory_space<vmem>>, %arg4: memref<128x128xbf16, #tpu.memory_space<vmem>>, %arg5: memref<128x1xf32, #tpu.memory_space<vmem>>, %arg6: memref<128x128xbf16, #tpu.memory_space<vmem>>, %arg7: memref<1x128xf32, #tpu.memory_space<vmem>>, %arg8: memref<128x128xbf16, #tpu.memory_space<vmem>>, %arg9: memref<128x128xbf16, #tpu.memory_space<vmem>>, %arg10: memref<128x128xf32, #tpu.memory_space<vmem>>) attributes {dimension_semantics = [#tpu.dimension_semantics<parallel>, #tpu.dimension_semantics<arbitrary>], iteration_bounds = array<i64: 4, 1>, scalar_prefetch = 0 : i64, scratch_operands = 1 : i64, tpu.core_type = #tpu.core_type<tc>, window_params = [{transform_indices = @transform_0, window_bounds = array<i64: 128, 512>}, {transform_indices = @transform_1, window_bounds = array<i64: 512, 128>}, {transform_indices = @transform_2, window_bounds = array<i64: 128, 128>}, {transform_indices = @transform_3, window_bounds = array<i64: 128, 1>}, {pipeline_mode = #tpu.pipeline_mode<synchronous>, transform_indices = @transform_4, window_bounds = array<i64: 128, 128>}, {pipeline_mode = #tpu.pipeline_mode<synchronous>, transform_indices = @transform_5, window_bounds = array<i64: 1, 128>}, {pipeline_mode = #tpu.pipeline_mode<synchronous>, transform_indices = @transform_6, window_bounds = array<i64: 128, 128>}, {transform_indices = @transform_7, window_bounds = array<i64: 128, 128>}]} {
    %c0_i32 = arith.constant 0 : i32
    %0 = arith.cmpi eq, %arg1, %c0_i32 : i32
    %1 = arith.extui %0 : i1 to i32
    %c0_i32_0 = arith.constant 0 : i32
    %2 = arith.cmpi ne, %1, %c0_i32_0 : i32
    scf.if %2 {
      %cst_10 = arith.constant 0.000000e+00 : f32
      %13 = vector.broadcast %cst_10 : f32 to vector<128x128xf32>
      %c0_11 = arith.constant 0 : index
      %c0_12 = arith.constant 0 : index
      %14 = vector.load %arg10[%c0_11, %c0_12] : memref<128x128xf32, #tpu.memory_space<vmem>>, vector<128x128xf32>
      tpu.vector_store %arg10[%c0_11, %c0_12], %13 {strides = array<i32>} : memref<128x128xf32, #tpu.memory_space<vmem>>, vector<128x128xf32>,
    } else {
    }
    %c0 = arith.constant 0 : index
    %c0_1 = arith.constant 0 : index
    %3 = vector.load %arg10[%c0, %c0_1] : memref<128x128xf32, #tpu.memory_space<vmem>>, vector<128x128xf32>
    %c0_2 = arith.constant 0 : index
    %c0_3 = arith.constant 0 : index
    %4 = vector.load %arg2[%c0_2, %c0_3] : memref<128x512xi8, #tpu.memory_space<vmem>>, vector<128x512xi8>
    %5 = arith.sitofp %4 : vector<128x512xi8> to vector<128x512xbf16>
    %c0_4 = arith.constant 0 : index
    %c0_5 = arith.constant 0 : index
    %6 = vector.load %arg3[%c0_4, %c0_5] : memref<512x128xbf16, #tpu.memory_space<vmem>>, vector<512x128xbf16>
    %cst = arith.constant dense<0.000000e+00> : vector<128x128xf32>
    %7 = tpu.matmul %5, %6, %cst {dimension_numbers = #tpu.dot_dimension_numbers<[1], [0], [0], [1], [0, 0, 1, 1], [], []>} : vector<128x512xbf16>, vector<512x128xbf16>, vector<128x128xf32> -> vector<128x128xf32>
    %8 = arith.addf %3, %7 : vector<128x128xf32>
    %c0_6 = arith.constant 0 : index
    %c0_7 = arith.constant 0 : index
    %9 = vector.load %arg10[%c0_6, %c0_7] : memref<128x128xf32, #tpu.memory_space<vmem>>, vector<128x128xf32>
    tpu.vector_store %arg10[%c0_6, %c0_7], %8 {strides = array<i32>} : memref<128x128xf32, #tpu.memory_space<vmem>>, vector<128x128xf32>,
    %c0_i32_8 = arith.constant 0 : i32
    %10 = arith.cmpi eq, %arg1, %c0_i32_8 : i32
    %11 = arith.extui %10 : i1 to i32
    %c0_i32_9 = arith.constant 0 : i32
    %12 = arith.cmpi ne, %11, %c0_i32_9 : i32
    scf.if %12 {
      %c0_10 = arith.constant 0 : index
      %c0_11 = arith.constant 0 : index
      %13 = vector.load %arg10[%c0_10, %c0_11] : memref<128x128xf32, #tpu.memory_space<vmem>>, vector<128x128xf32>
      %c0_12 = arith.constant 0 : index
      %c0_13 = arith.constant 0 : index
      %14 = vector.load %arg5[%c0_12, %c0_13] : memref<128x1xf32, #tpu.memory_space<vmem>>, vector<128x1xf32>
      %15 = vector.broadcast %14 : vector<128x1xf32> to vector<128x128xf32>
      %16 = arith.mulf %13, %15 : vector<128x128xf32>
      %17 = arith.truncf %16 : vector<128x128xf32> to vector<128x128xbf16>
      %c0_14 = arith.constant 0 : index
      %c0_15 = arith.constant 0 : index
      %18 = vector.load %arg6[%c0_14, %c0_15] : memref<128x128xbf16, #tpu.memory_space<vmem>>, vector<128x128xbf16>
      %cst_16 = arith.constant dense<0.000000e+00> : vector<128x128xf32>
      %19 = tpu.matmul %17, %18, %cst_16 {dimension_numbers = #tpu.dot_dimension_numbers<[1], [0], [0], [1], [0, 0, 1, 1], [], []>} : vector<128x128xbf16>, vector<128x128xbf16>, vector<128x128xf32> -> vector<128x128xf32>
      %c0_17 = arith.constant 0 : index
      %c0_18 = arith.constant 0 : index
      %20 = vector.load %arg7[%c0_17, %c0_18] : memref<1x128xf32, #tpu.memory_space<vmem>>, vector<1x128xf32>
      %21 = vector.broadcast %20 : vector<1x128xf32> to vector<128x128xf32>
      %22 = arith.addf %19, %21 : vector<128x128xf32>
      %c0_19 = arith.constant 0 : index
      %c0_20 = arith.constant 0 : index
      %23 = vector.load %arg4[%c0_19, %c0_20] : memref<128x128xbf16, #tpu.memory_space<vmem>>, vector<128x128xbf16>
      %c0_21 = arith.constant 0 : index
      %c0_22 = arith.constant 0 : index
      %24 = vector.load %arg8[%c0_21, %c0_22] : memref<128x128xbf16, #tpu.memory_space<vmem>>, vector<128x128xbf16>
      %cst_23 = arith.constant dense<0.000000e+00> : vector<128x128xf32>
      %25 = tpu.matmul %23, %24, %cst_23 {dimension_numbers = #tpu.dot_dimension_numbers<[1], [0], [0], [1], [0, 0, 1, 1], [], []>} : vector<128x128xbf16>, vector<128x128xbf16>, vector<128x128xf32> -> vector<128x128xf32>
      %26 = arith.addf %22, %25 : vector<128x128xf32>
      %cst_24 = arith.constant 0.000000e+00 : f32
      %27 = vector.broadcast %cst_24 : f32 to vector<128x128xf32>
      %28 = arith.maximumf %26, %27 : vector<128x128xf32>
      %29 = arith.truncf %28 : vector<128x128xf32> to vector<128x128xbf16>
      %c0_25 = arith.constant 0 : index
      %c0_26 = arith.constant 0 : index
      %30 = vector.load %arg9[%c0_25, %c0_26] : memref<128x128xbf16, #tpu.memory_space<vmem>>, vector<128x128xbf16>
      tpu.vector_store %arg9[%c0_25, %c0_26], %29 {strides = array<i32>} : memref<128x128xbf16, #tpu.memory_space<vmem>>, vector<128x128xbf16>,
    } else {
    }
    return
  }
  func.func @transform_0(%arg0: i32, %arg1: i32) -> (i32, i32) {
    %c0_i32 = arith.constant 0 : i32
    return %arg0, %arg1 : i32, i32
  }
  func.func @transform_1(%arg0: i32, %arg1: i32) -> (i32, i32) {
    %c0_i32 = arith.constant 0 : i32
    %c0_i32_0 = arith.constant 0 : i32
    return %arg1, %c0_i32 : i32, i32
  }
  func.func @transform_2(%arg0: i32, %arg1: i32) -> (i32, i32) {
    %c0_i32 = arith.constant 0 : i32
    %c0_i32_0 = arith.constant 0 : i32
    return %arg0, %c0_i32 : i32, i32
  }
  func.func @transform_3(%arg0: i32, %arg1: i32) -> (i32, i32) {
    %c0_i32 = arith.constant 0 : i32
    %c0_i32_0 = arith.constant 0 : i32
    return %arg0, %c0_i32 : i32, i32
  }
  func.func @transform_4(%arg0: i32, %arg1: i32) -> (i32, i32) {
    %c0_i32 = arith.constant 0 : i32
    %c0_i32_0 = arith.constant 0 : i32
    %c0_i32_1 = arith.constant 0 : i32
    return %c0_i32, %c0_i32_0 : i32, i32
  }
  func.func @transform_5(%arg0: i32, %arg1: i32) -> (i32, i32) {
    %c0_i32 = arith.constant 0 : i32
    %c0_i32_0 = arith.constant 0 : i32
    %c0_i32_1 = arith.constant 0 : i32
    return %c0_i32, %c0_i32_0 : i32, i32
  }
  func.func @transform_6(%arg0: i32, %arg1: i32) -> (i32, i32) {
    %c0_i32 = arith.constant 0 : i32
    %c0_i32_0 = arith.constant 0 : i32
    %c0_i32_1 = arith.constant 0 : i32
    return %c0_i32, %c0_i32_0 : i32, i32
  }
  func.func @transform_7(%arg0: i32, %arg1: i32) -> (i32, i32) {
    %c0_i32 = arith.constant 0 : i32
    %c0_i32_0 = arith.constant 0 : i32
    return %arg0, %c0_i32 : i32, i32
  }
}

</mosaic_0001>

<llo_original>
// kernel: tpu_custom_call.1
$region0: #{tpu_custom_call.1}
  #allocation0 [shape = 'u32[]', space=smem, size = 0x4, offset = 0x4, fixed_abs, tag = 'smem constant byte address 0x4 - core index']
  #allocation1 [shape = 'u32[144,128]{1,0:T(1,128)}', space=vmem, size = 0x12000, scoped, tag = 'internal scratch']
  #allocation2 [shape = 'f32[128,128]{1,0:T(8,128)}', space=vmem, size = 0x10000, scoped, tag = 'scratch operand']
  %s0 = inlined_call_operand.vmem [shape: s8[512,512], index: 0, kind: input, shape index: {}]
  %s1 = inlined_call_operand.hbm [shape: bf16[512,128], index: 1, kind: input, shape index: {}]
  %s2 = inlined_call_operand.hbm [shape: bf16[512,128], index: 2, kind: input, shape index: {}]
  %s3 = inlined_call_operand.vmem [shape: f32[512,1], index: 3, kind: input, shape index: {}]
  %s4 = inlined_call_operand.hbm [shape: bf16[128,128], index: 4, kind: input, shape index: {}]
  %s5 = inlined_call_operand.vmem [shape: f32[1,128], index: 5, kind: input, shape index: {}]
  %s6 = inlined_call_operand.hbm [shape: bf16[128,128], index: 6, kind: input, shape index: {}]
  %s7 = inlined_call_operand.hbm [shape: bf16[512,128], index: 7, kind: output, shape index: {}]
  %s8 = sld [smem:[#allocation0]]
  $region85: #{tpu_custom_call.1} parent=0
    _
  %s10 = ssub.s32 1, %s8
  %s11 = scalar_select 0, %s10, %s8
  $region1: #{tpu_custom_call.1} parent=0
    #allocation3 [shape = 'u8[131072]{0}', space=vmem, size = 0x20000, scoped, tag = 'input window, operand 1, single buffered']
    #allocation4 [shape = 's32[2]{0}', space=sflag, size = 0x8, scoped, tag = 'scoped memory for tpu_custom_call.1']
    #allocation5 [shape = 's32[2]{0}', space=sflag, size = 0x8, scoped, tag = 'scoped memory for tpu_custom_call.1']
    #allocation6 [shape = 'u8[65536]{0}', space=vmem, size = 0x10000, scoped, tag = 'input window, operand 2']
    #allocation7 [shape = 's32[2]{0}', space=sflag, size = 0x8, scoped, tag = 'scoped memory for tpu_custom_call.1']
    #allocation8 [shape = 'u8[32768]{0}', space=vmem, size = 0x8000, scoped, tag = 'input window, operand 4, single buffered']
    #allocation9 [shape = 'u8[32768]{0}', space=vmem, size = 0x8000, scoped, tag = 'input window, operand 6, single buffered']
    #allocation10 [shape = 's32[1]{0}', space=sflag, size = 0x4, scoped, tag = 'scoped memory for tpu_custom_call.1']
    #allocation11 [shape = 'u8[65536]{0}', space=vmem, size = 0x10000, scoped, tag = 'output window, operand 0']
    %12 = vsyncpa [#allocation4], 0
    %13 = vsyncpa [#allocation7], 0
    %s14 = scalar_lea.sflag [#allocation7], 1
    %15 = vsyncpa %s14, 0
    %16 = vsyncpa [#allocation10], 0
    %17 = vsyncpa [#allocation5], 0
    %s18 = scalar_lea.sflag [#allocation5], 1
    %19 = vsyncpa %s18, 0
    loop: start=0, step=1, limit=6
    $region2: #{tpu_custom_call.1} parent=1 // loop_pre_header
      _
    $region3: #{tpu_custom_call.1} parent=1 // loop_header
      %s21 = sphi 0, %s25
      %p22 = scmp.ge.s32.totalorder %s21, 6
      %s28 = sphi 0, %s40
      %s29 = sphi 0, %s36
      %s30 = sphi 0, %s28
      %s31 = sphi 0, %s29
      %s32 = sphi 0, %s30
      %s33 = sphi 0, %s31
      %s45 = sphi 0, %s47
      %s48 = sphi 0, %s45
      %s49 = sphi 0, %s48
      %s65 = sphi 0, %s49
      %s71 = sphi 0, %s73
      %s74 = sphi 0, %s71
      %s75 = sphi 0, %s74
      %s91 = sphi 0, %s75
      %s97 = sphi 0, %s99
      %s100 = sphi 0, %s97
      %s101 = sphi 0, %s100
      %s117 = sphi 0, %s101
      %s123 = sphi 0, %s125
      %s126 = sphi 0, %s123
      %s127 = sphi 0, %s126
      %s143 = sphi 0, %s127
      %s147 = sphi 0, %s147
      %s149 = sphi 0, %s147
      %s150 = sphi 0, %s149
      %s164 = sphi 0, %s150
      %s168 = sphi 0, %s168
      %s170 = sphi 0, %s168
      %s171 = sphi 0, %s170
      %s185 = sphi 0, %s171
      %s189 = sphi 0, %s189
      %s191 = sphi 0, %s189
      %s192 = sphi 0, %s191
      %s206 = sphi 0, %s192
      %s212 = sphi 0, %s214
      %s215 = sphi 0, %s212
      %s216 = sphi 0, %s215
      %s232 = sphi 0, %s216
    $region4: #{tpu_custom_call.1} parent=1 // loop_header_branch
      %24 = sbr.rel (%p22) target = $region8
    $region5: #{tpu_custom_call.1} parent=1 // loop_body
      %s26 = ssub.s32 %s21, 1
      %s27 = ssub.s32 %s21, 2
      %s34 = sadd.s32 1, %s29
      %p35 = scmp.ge.s32.totalorder %s34, 1
      %s36 = scalar_select %p35, 0, %s34
      %s37 = sadd.s32 1, %s28
      %s38 = scalar_select %p35, %s37, %s28
      %p39 = scmp.ge.s32.totalorder %s38, 4
      %s40 = scalar_select %p39, 0, %s38
      %s41 = ssub.s32 %s28, %s40
      %s42 = ssub.s32 %s29, %s36
      %s43 = sor.u32 %s41, %s42
      %p44 = scmp.eq.s32.totalorder %s43, 0
      %s46 = sadd.s32 %s45, 1
      %s47 = scalar_select %p44, %s45, %s46
      %p50 = pneg %p44
      %p51 = scmp.eq.s32.totalorder %s21, 3
      %p52 = por %p50, %p51
      %p53 = scmp.ne.s32.totalorder %s45, %s48
      %p54 = scmp.eq.s32.totalorder %s21, 0
      %p55 = por %p53, %p54
      %p56 = scmp.ne.s32.totalorder %s45, %s48
      %p57 = scmp.eq.s32.totalorder %s26, 3
      %p58 = por %p56, %p57
      %p59 = scmp.ne.s32.totalorder %s48, %s49
      %p60 = scmp.eq.s32.totalorder %s26, 0
      %p61 = por %p59, %p60
      %p62 = scmp.ne.s32.totalorder %s48, %s49
      %p63 = scmp.eq.s32.totalorder %s27, 3
      %p64 = por %p62, %p63
      %p66 = scmp.ne.s32.totalorder %s49, %s65
      %p67 = scmp.eq.s32.totalorder %s27, 0
      %p68 = por %p66, %p67
      %s69 = ssub.s32 %s29, %s36
      %p70 = scmp.eq.s32.totalorder %s69, 0
      %s72 = sadd.s32 %s71, 1
      %s73 = scalar_select %p70, %s71, %s72
      %p76 = pneg %p70
      %p77 = scmp.eq.s32.totalorder %s21, 3
      %p78 = por %p76, %p77
      %p79 = scmp.ne.s32.totalorder %s71, %s74
      %p80 = scmp.eq.s32.totalorder %s21, 0
      %p81 = por %p79, %p80
      %p82 = scmp.ne.s32.totalorder %s71, %s74
      %p83 = scmp.eq.s32.totalorder %s26, 3
      %p84 = por %p82, %p83
      %p85 = scmp.ne.s32.totalorder %s74, %s75
      %p86 = scmp.eq.s32.totalorder %s26, 0
      %p87 = por %p85, %p86
      %p88 = scmp.ne.s32.totalorder %s74, %s75
      %p89 = scmp.eq.s32.totalorder %s27, 3
      %p90 = por %p88, %p89
      %p92 = scmp.ne.s32.totalorder %s75, %s91
      %p93 = scmp.eq.s32.totalorder %s27, 0
      %p94 = por %p92, %p93
      %s95 = ssub.s32 %s28, %s40
      %p96 = scmp.eq.s32.totalorder %s95, 0
      %s98 = sadd.s32 %s97, 1
      %s99 = scalar_select %p96, %s97, %s98
      %p102 = pneg %p96
      %p103 = scmp.eq.s32.totalorder %s21, 3
      %p104 = por %p102, %p103
      %p105 = scmp.ne.s32.totalorder %s97, %s100
      %p106 = scmp.eq.s32.totalorder %s21, 0
      %p107 = por %p105, %p106
      %p108 = scmp.ne.s32.totalorder %s97, %s100
      %p109 = scmp.eq.s32.totalorder %s26, 3
      %p110 = por %p108, %p109
      %p111 = scmp.ne.s32.totalorder %s100, %s101
      %p112 = scmp.eq.s32.totalorder %s26, 0
      %p113 = por %p111, %p112
      %p114 = scmp.ne.s32.totalorder %s100, %s101
      %p115 = scmp.eq.s32.totalorder %s27, 3
      %p116 = por %p114, %p115
      %p118 = scmp.ne.s32.totalorder %s101, %s117
      %p119 = scmp.eq.s32.totalorder %s27, 0
      %p120 = por %p118, %p119
      %s121 = ssub.s32 %s28, %s40
      %p122 = scmp.eq.s32.totalorder %s121, 0
      %s124 = sadd.s32 %s123, 1
      %s125 = scalar_select %p122, %s123, %s124
      %p128 = pneg %p122
      %p129 = scmp.eq.s32.totalorder %s21, 3
      %p130 = por %p128, %p129
      %p131 = scmp.ne.s32.totalorder %s123, %s126
      %p132 = scmp.eq.s32.totalorder %s21, 0
      %p133 = por %p131, %p132
      %p134 = scmp.ne.s32.totalorder %s123, %s126
      %p135 = scmp.eq.s32.totalorder %s26, 3
      %p136 = por %p134, %p135
      %p137 = scmp.ne.s32.totalorder %s126, %s127
      %p138 = scmp.eq.s32.totalorder %s26, 0
      %p139 = por %p137, %p138
      %p140 = scmp.ne.s32.totalorder %s126, %s127
      %p141 = scmp.eq.s32.totalorder %s27, 3
      %p142 = por %p140, %p141
      %p144 = scmp.ne.s32.totalorder %s127, %s143
      %p145 = scmp.eq.s32.totalorder %s27, 0
      %p146 = por %p144, %p145
      %s148 = sadd.s32 %s147, 1
      %p151 = scmp.eq.s32.totalorder %s21, 3
      %p152 = scmp.ne.s32.totalorder %s147, %s149
      %p153 = scmp.eq.s32.totalorder %s21, 0
      %p154 = por %p152, %p153
      %p155 = scmp.ne.s32.totalorder %s147, %s149
      %p156 = scmp.eq.s32.totalorder %s26, 3
      %p157 = por %p155, %p156
      %p158 = scmp.ne.s32.totalorder %s149, %s150
      %p159 = scmp.eq.s32.totalorder %s26, 0
      %p160 = por %p158, %p159
      %p161 = scmp.ne.s32.totalorder %s149, %s150
      %p162 = scmp.eq.s32.totalorder %s27, 3
      %p163 = por %p161, %p162
      %p165 = scmp.ne.s32.totalorder %s150, %s164
      %p166 = scmp.eq.s32.totalorder %s27, 0
      %p167 = por %p165, %p166
      %s169 = sadd.s32 %s168, 1
      %p172 = scmp.eq.s32.totalorder %s21, 3
      %p173 = scmp.ne.s32.totalorder %s168, %s170
      %p174 = scmp.eq.s32.totalorder %s21, 0
      %p175 = por %p173, %p174
      %p176 = scmp.ne.s32.totalorder %s168, %s170
      %p177 = scmp.eq.s32.totalorder %s26, 3
      %p178 = por %p176, %p177
      %p179 = scmp.ne.s32.totalorder %s170, %s171
      %p180 = scmp.eq.s32.totalorder %s26, 0
      %p181 = por %p179, %p180
      %p182 = scmp.ne.s32.totalorder %s170, %s171
      %p183 = scmp.eq.s32.totalorder %s27, 3
      %p184 = por %p182, %p183
      %p186 = scmp.ne.s32.totalorder %s171, %s185
      %p187 = scmp.eq.s32.totalorder %s27, 0
      %p188 = por %p186, %p187
      %s190 = sadd.s32 %s189, 1
      %p193 = scmp.eq.s32.totalorder %s21, 3
      %p194 = scmp.ne.s32.totalorder %s189, %s191
      %p195 = scmp.eq.s32.totalorder %s21, 0
      %p196 = por %p194, %p195
      %p197 = scmp.ne.s32.totalorder %s189, %s191
      %p198 = scmp.eq.s32.totalorder %s26, 3
      %p199 = por %p197, %p198
      %p200 = scmp.ne.s32.totalorder %s191, %s192
      %p201 = scmp.eq.s32.totalorder %s26, 0
      %p202 = por %p200, %p201
      %p203 = scmp.ne.s32.totalorder %s191, %s192
      %p204 = scmp.eq.s32.totalorder %s27, 3
      %p205 = por %p203, %p204
      %p207 = scmp.ne.s32.totalorder %s192, %s206
      %p208 = scmp.eq.s32.totalorder %s27, 0
      %p209 = por %p207, %p208
      %s210 = ssub.s32 %s28, %s40
      %p211 = scmp.eq.s32.totalorder %s210, 0
      %s213 = sadd.s32 %s212, 1
      %s214 = scalar_select %p211, %s212, %s213
      %p217 = pneg %p211
      %p218 = scmp.eq.s32.totalorder %s21, 3
      %p219 = por %p217, %p218
      %p220 = scmp.ne.s32.totalorder %s212, %s215
      %p221 = scmp.eq.s32.totalorder %s21, 0
      %p222 = por %p220, %p221
      %p223 = scmp.ne.s32.totalorder %s212, %s215
      %p224 = scmp.eq.s32.totalorder %s26, 3
      %p225 = por %p223, %p224
      %p226 = scmp.ne.s32.totalorder %s215, %s216
      %p227 = scmp.eq.s32.totalorder %s26, 0
      %p228 = por %p226, %p227
      %p229 = scmp.ne.s32.totalorder %s215, %s216
      %p230 = scmp.eq.s32.totalorder %s27, 3
      %p231 = por %p229, %p230
      %p233 = scmp.ne.s32.totalorder %s216, %s232
      %p234 = scmp.eq.s32.totalorder %s27, 0
      %p235 = por %p233, %p234
      %p236 = scmp.le.s32.totalorder 1, %s21
      %p237 = scmp.lt.s32.totalorder %s21, 5
      %p238 = pnand %p236, %p237
      %p239 = pneg %p238
      // Predicated region
      $region9: #{tpu_custom_call.1} parent=5 // pred_check
        _
      $region10: #{tpu_custom_call.1} parent=5 // pred_check_branch
        %241 = sbr.rel (%p238) target = $region12
      $region11: #{tpu_custom_call.1} parent=5 // pred_region
        %s242 = ssub.s32 %s21, 1
        // Predicated region
        $region13: #{tpu_custom_call.1} parent=11 // pred_check
          %p243 = pneg %p87
        $region14: #{tpu_custom_call.1} parent=11 // pred_check_branch
          %245 = sbr.rel (%p243) target = $region16
        $region15: #{tpu_custom_call.1} parent=11 // pred_region
          %s246 = smul.u32 64, %s31
          %s248 = ssub.s32 4096, 4096
          %249 = vsyncadd [#allocation4], %s248
          %s250 = smul.addr %s246, 64
          %s251 = scalar_lea.hbm %s1, %s250
          %s252 = sshll.u32 [#allocation3], 4
          %s253 = int_to_ptr.vmem [resolvable:$true] %s252
          %258 = dma.hbm_to_vmem [thread:$0]  %s251, 4096, %s253, [#allocation4], 64, 64, 4
        $region16: #{tpu_custom_call.1} parent=11 // pred_fallthru
          _
        // Predicated region
        $region17: #{tpu_custom_call.1} parent=11 // pred_check
          %p259 = pneg %p160
        $region18: #{tpu_custom_call.1} parent=11 // pred_check_branch
          %261 = sbr.rel (%p259) target = $region20
        $region19: #{tpu_custom_call.1} parent=11 // pred_region
          %s263 = ssub.s32 1024, 1024
          %264 = vsyncadd [#allocation7], %s263
          %s265 = sshll.u32 [#allocation8], 4
          %s266 = int_to_ptr.vmem [resolvable:$true] %s265
          %271 = dma.hbm_to_vmem [thread:$0]  %s4, 1024, %s266, [#allocation7], 64, 64, 4
        $region20: #{tpu_custom_call.1} parent=11 // pred_fallthru
          _
        // Predicated region
        $region21: #{tpu_custom_call.1} parent=11 // pred_check
          %p272 = pneg %p181
        $region22: #{tpu_custom_call.1} parent=11 // pred_check_branch
          %274 = sbr.rel (%p272) target = $region24
        $region23: #{tpu_custom_call.1} parent=11 // pred_region
          _
        $region24: #{tpu_custom_call.1} parent=11 // pred_fallthru
          _
        // Predicated region
        $region25: #{tpu_custom_call.1} parent=11 // pred_check
          %p275 = pneg %p202
        $region26: #{tpu_custom_call.1} parent=11 // pred_check_branch
          %277 = sbr.rel (%p275) target = $region28
        $region27: #{tpu_custom_call.1} parent=11 // pred_region
          %s279 = ssub.s32 1024, 1024
          %280 = vsyncadd [#allocation10], %s279
          %s281 = sshll.u32 [#allocation9], 4
          %s282 = int_to_ptr.vmem [resolvable:$true] %s281
          %287 = dma.hbm_to_vmem [thread:$0]  %s6, 1024, %s282, [#allocation10], 64, 64, 4
        $region28: #{tpu_custom_call.1} parent=11 // pred_fallthru
          _
      $region12: #{tpu_custom_call.1} parent=5 // pred_fallthru
        _
      %p288 = scmp.lt.s32.totalorder %s21, 4
      // Predicated region
      $region29: #{tpu_custom_call.1} parent=5 // pred_check
        %p289 = pneg %p288
      $region30: #{tpu_custom_call.1} parent=5 // pred_check_branch
        %291 = sbr.rel (%p289) target = $region32
      $region31: #{tpu_custom_call.1} parent=5 // pred_region
        // Predicated region
        $region33: #{tpu_custom_call.1} parent=31 // pred_check
          %p292 = pneg %p55
        $region34: #{tpu_custom_call.1} parent=31 // pred_check_branch
          %294 = sbr.rel (%p292) target = $region36
        $region35: #{tpu_custom_call.1} parent=31 // pred_region
          %s295 = smul.u32 4, %s28
          %s296 = smul.u32 4, %s29
          %p297 = scmp.lt.s32.totalorder %s295, 15
          %s298 = scalar_select %p297, %s295, 15
          %p299 = scmp.lt.s32.totalorder %s296, 3
          %s300 = scalar_select %p299, %s296, 3
          %s301 = smul.addr %s298, 4
          %s302 = sadd.s32 %s300, %s301
          %s303 = smul.addr %s302, 8
          %s304 = scalar_lea.vmem %s0, %s303
          %s305 = smul.u32 4, %s28
          %s306 = smul.u32 4, %s29
        $region36: #{tpu_custom_call.1} parent=31 // pred_fallthru
          _
        // Predicated region
        $region37: #{tpu_custom_call.1} parent=31 // pred_check
          %p307 = pneg %p107
        $region38: #{tpu_custom_call.1} parent=31 // pred_check_branch
          %309 = sbr.rel (%p307) target = $region40
        $region39: #{tpu_custom_call.1} parent=31 // pred_region
          %s310 = sand.u32 %s21, 1
          %s311 = scalar_lea.sflag [#allocation7], %s310
          %s312 = sand.u32 %s97, 1
          %s313 = smul.addr %s312, 64
          %s314 = scalar_lea.vmem [#allocation6], %s313
          %s315 = smul.u32 16, %s28
          %s317 = ssub.s32 1024, 1024
          %318 = vsyncadd %s311, %s317
          %s319 = smul.addr %s315, 64
          %s320 = scalar_lea.hbm %s2, %s319
          %s321 = sshll.u32 %s314, 4
          %s322 = int_to_ptr.vmem [resolvable:$true] %s321
          %327 = dma.hbm_to_vmem [thread:$0]  %s320, 1024, %s322, %s311, 64, 64, 4
        $region40: #{tpu_custom_call.1} parent=31 // pred_fallthru
          _
        // Predicated region
        $region41: #{tpu_custom_call.1} parent=31 // pred_check
          %p328 = pneg %p133
        $region42: #{tpu_custom_call.1} parent=31 // pred_check_branch
          %330 = sbr.rel (%p328) target = $region44
        $region43: #{tpu_custom_call.1} parent=31 // pred_region
          %s331 = smul.u32 16, %s28
          %p332 = scmp.lt.s32.totalorder %s331, 63
          %s333 = scalar_select %p332, %s331, 63
          %s334 = smul.addr %s333, 8
          %s335 = scalar_lea.vmem %s3, %s334
          %s336 = smul.u32 16, %s28
        $region44: #{tpu_custom_call.1} parent=31 // pred_fallthru
          _
      $region32: #{tpu_custom_call.1} parent=5 // pred_fallthru
        _
      %p337 = scmp.le.s32.totalorder 1, %s21
      %p338 = scmp.lt.s32.totalorder %s21, 5
      %p339 = pnand %p337, %p338
      %p340 = pneg %p339
      // Predicated region
      $region45: #{tpu_custom_call.1} parent=5 // pred_check
        _
      $region46: #{tpu_custom_call.1} parent=5 // pred_check_branch
        %342 = sbr.rel (%p339) target = $region48
      $region47: #{tpu_custom_call.1} parent=5 // pred_region
        %s343 = ssub.s32 %s21, 1
        // Predicated region
        $region49: #{tpu_custom_call.1} parent=47 // pred_check
          %p344 = pneg %p87
        $region50: #{tpu_custom_call.1} parent=47 // pred_check_branch
          %346 = sbr.rel (%p344) target = $region52
        $region51: #{tpu_custom_call.1} parent=47 // pred_region
          %347 = dma.done [#allocation4], 4096
        $region52: #{tpu_custom_call.1} parent=47 // pred_fallthru
          _
        %s348 = sand.u32 %s26, 1
        %s349 = scalar_lea.sflag [#allocation7], %s348
        %s350 = sand.u32 %s100, 1
        %s351 = smul.addr %s350, 64
        %s352 = scalar_lea.vmem [#allocation6], %s351
        // Predicated region
        $region53: #{tpu_custom_call.1} parent=47 // pred_check
          %p353 = pneg %p113
        $region54: #{tpu_custom_call.1} parent=47 // pred_check_branch
          %355 = sbr.rel (%p353) target = $region56
        $region55: #{tpu_custom_call.1} parent=47 // pred_region
          %356 = dma.done %s349, 1024
        $region56: #{tpu_custom_call.1} parent=47 // pred_fallthru
          _
        // Predicated region
        $region57: #{tpu_custom_call.1} parent=47 // pred_check
          %p357 = pneg %p160
        $region58: #{tpu_custom_call.1} parent=47 // pred_check_branch
          %359 = sbr.rel (%p357) target = $region60
        $region59: #{tpu_custom_call.1} parent=47 // pred_region
          %360 = dma.done [#allocation7], 1024
        $region60: #{tpu_custom_call.1} parent=47 // pred_fallthru
          _
        // Predicated region
        $region61: #{tpu_custom_call.1} parent=47 // pred_check
          %p361 = pneg %p202
        $region62: #{tpu_custom_call.1} parent=47 // pred_check_branch
          %363 = sbr.rel (%p361) target = $region64
        $region63: #{tpu_custom_call.1} parent=47 // pred_region
          %364 = dma.done [#allocation10], 1024
        $region64: #{tpu_custom_call.1} parent=47 // pred_fallthru
          _
        %s365 = smul.u32 4, %s30
        %s366 = smul.u32 4, %s31
        %p367 = scmp.lt.s32.totalorder %s365, 15
        %s368 = scalar_select %p367, %s365, 15
        %p369 = scmp.lt.s32.totalorder %s366, 3
        %s370 = scalar_select %p369, %s366, 3
        %s371 = smul.addr %s368, 4
        %s372 = sadd.s32 %s370, %s371
        %s373 = smul.addr %s372, 8
        %s374 = scalar_lea.vmem %s0, %s373
        %p375 = pneg %p61
        %p376 = pneg %p58
        %p377 = pneg %p87
        %p378 = pneg %p84
        %s379 = sand.u32 %s26, 1
        %s380 = scalar_lea.sflag [#allocation7], %s379
        %s381 = sand.u32 %s100, 1
        %s382 = smul.addr %s381, 64
        %s383 = scalar_lea.vmem [#allocation6], %s382
        %p384 = pneg %p113
        %p385 = pneg %p110
        %s386 = smul.u32 16, %s30
        %p387 = scmp.lt.s32.totalorder %s386, 63
        %s388 = scalar_select %p387, %s386, 63
        %s389 = smul.addr %s388, 8
        %s390 = scalar_lea.vmem %s3, %s389
        %p391 = pneg %p139
        %p392 = pneg %p136
        %p393 = pneg %p160
        %p394 = pneg %p157
        %p395 = pneg %p181
        %p396 = pneg %p178
        %p397 = pneg %p202
        %p398 = pneg %p199
        %p399 = pneg %p228
        %p400 = pneg %p225
        %s401 = sand.u32 %s215, 1
        %s402 = scalar_lea.sflag [#allocation5], %s401
        %s403 = sand.u32 %s215, 1
        %s404 = smul.addr %s403, 64
        %s405 = scalar_lea.vmem [#allocation11], %s404
        %s406 = smul.u32 4, %s30
        %s407 = smul.u32 4, %s31
        %p408 = scmp.lt.s32.totalorder %s406, 15
        %s409 = scalar_select %p408, %s406, 15
        %p410 = scmp.lt.s32.totalorder %s407, 3
        %s411 = scalar_select %p410, %s407, 3
        %s412 = smul.addr %s409, 4
        %s413 = sadd.s32 %s411, %s412
        %s414 = smul.addr %s413, 8
        %s415 = scalar_lea.vmem %s0, %s414
        %s416 = smul.u32 4, %s30
        %s417 = smul.u32 4, %s31
        %s418 = smul.u32 64, %s31
        %s419 = smul.u32 16, %s30
        %s420 = smul.u32 16, %s30
        %p421 = scmp.lt.s32.totalorder %s420, 63
        %s422 = scalar_select %p421, %s420, 63
        %s423 = smul.addr %s422, 8
        %s424 = scalar_lea.vmem %s3, %s423
        %s425 = smul.u32 16, %s30
        %s426 = smul.u32 16, %s30
        %p428 = scmp.eq.s32.totalorder %s31, 0
        // Predicated region
        $region65: #{tpu_custom_call.1} parent=47 // pred_check
          %p429 = pneg %p428
        $region66: #{tpu_custom_call.1} parent=47 // pred_check_branch
          %431 = sbr.rel (%p429) target = $region68
        $region67: #{tpu_custom_call.1} parent=47 // pred_region
          %432 = vst [vmem:[#allocation2] sm:$0xff] 0.0
          %433 = vst [vmem:[#allocation2 + $0x8] sm:$0xff] 0.0
          %434 = vst [vmem:[#allocation2 + $0x10] sm:$0xff] 0.0
          %435 = vst [vmem:[#allocation2 + $0x18] sm:$0xff] 0.0
          %436 = vst [vmem:[#allocation2 + $0x20] sm:$0xff] 0.0
          %437 = vst [vmem:[#allocation2 + $0x28] sm:$0xff] 0.0
          %438 = vst [vmem:[#allocation2 + $0x30] sm:$0xff] 0.0
          %439 = vst [vmem:[#allocation2 + $0x38] sm:$0xff] 0.0
          %440 = vst [vmem:[#allocation2 + $0x40] sm:$0xff] 0.0
          %441 = vst [vmem:[#allocation2 + $0x48] sm:$0xff] 0.0
          %442 = vst [vmem:[#allocation2 + $0x50] sm:$0xff] 0.0
          %443 = vst [vmem:[#allocation2 + $0x58] sm:$0xff] 0.0
          %444 = vst [vmem:[#allocation2 + $0x60] sm:$0xff] 0.0
          %445 = vst [vmem:[#allocation2 + $0x68] sm:$0xff] 0.0
          %446 = vst [vmem:[#allocation2 + $0x70] sm:$0xff] 0.0
          %447 = vst [vmem:[#allocation2 + $0x78] sm:$0xff] 0.0
        $region68: #{tpu_custom_call.1} parent=47 // pred_fallthru
          _
        %v448 = vld [vmem:[#allocation2] sm:$0xff]
        %v449 = vld [vmem:[#allocation2 + $0x8] sm:$0xff]
        %v450 = vld [vmem:[#allocation2 + $0x10] sm:$0xff]
        %v451 = vld [vmem:[#allocation2 + $0x18] sm:$0xff]
        %v452 = vld [vmem:[#allocation2 + $0x20] sm:$0xff]
        %v453 = vld [vmem:[#allocation2 + $0x28] sm:$0xff]
        %v454 = vld [vmem:[#allocation2 + $0x30] sm:$0xff]
        %v455 = vld [vmem:[#allocation2 + $0x38] sm:$0xff]
        %v456 = vld [vmem:[#allocation2 + $0x40] sm:$0xff]
        %v457 = vld [vmem:[#allocation2 + $0x48] sm:$0xff]
        %v458 = vld [vmem:[#allocation2 + $0x50] sm:$0xff]
        %v459 = vld [vmem:[#allocation2 + $0x58] sm:$0xff]
        %v460 = vld [vmem:[#allocation2 + $0x60] sm:$0xff]
        %v461 = vld [vmem:[#allocation2 + $0x68] sm:$0xff]
        %v462 = vld [vmem:[#allocation2 + $0x70] sm:$0xff]
        %v463 = vld [vmem:[#allocation2 + $0x78] sm:$0xff]
        %v464 = vld [vmem:[%s415] sm:$0xff]
        %v465 = vld [vmem:[%s415 + $0x8] sm:$0xff]
        %v466 = vld [vmem:[%s415 + $0x10] sm:$0xff]
        %v467 = vld [vmem:[%s415 + $0x18] sm:$0xff]
        %v468 = vld [vmem:[%s415 + $0x20] sm:$0xff]
        %v469 = vld [vmem:[%s415 + $0x28] sm:$0xff]
        %v470 = vld [vmem:[%s415 + $0x30] sm:$0xff]
        %v471 = vld [vmem:[%s415 + $0x38] sm:$0xff]
        %v472 = vld [vmem:[%s415 + $0x40] sm:$0xff]
        %v473 = vld [vmem:[%s415 + $0x48] sm:$0xff]
        %v474 = vld [vmem:[%s415 + $0x50] sm:$0xff]
        %v475 = vld [vmem:[%s415 + $0x58] sm:$0xff]
        %v476 = vld [vmem:[%s415 + $0x60] sm:$0xff]
        %v477 = vld [vmem:[%s415 + $0x68] sm:$0xff]
        %v478 = vld [vmem:[%s415 + $0x70] sm:$0xff]
        %v479 = vld [vmem:[%s415 + $0x78] sm:$0xff]
        %v480 = vunpack.c.l.s8.bf16 %v464
        %v481 = vunpack.c.l.s8.bf16 %v465
        %v482 = vunpack.c.l.s8.bf16 %v466
        %v483 = vunpack.c.l.s8.bf16 %v467
        %v484 = vunpack.c.h.s8.bf16 %v464
        %v485 = vunpack.c.h.s8.bf16 %v465
        %v486 = vunpack.c.h.s8.bf16 %v466
        %v487 = vunpack.c.h.s8.bf16 %v467
        %v488 = vunpack.c.l.s8.bf16 %v468
        %v489 = vunpack.c.l.s8.bf16 %v469
        %v490 = vunpack.c.l.s8.bf16 %v470
        %v491 = vunpack.c.l.s8.bf16 %v471
        %v492 = vunpack.c.h.s8.bf16 %v468
        %v493 = vunpack.c.h.s8.bf16 %v469
        %v494 = vunpack.c.h.s8.bf16 %v470
        %v495 = vunpack.c.h.s8.bf16 %v471
        %v496 = vunpack.c.l.s8.bf16 %v472
        %v497 = vunpack.c.l.s8.bf16 %v473
        %v498 = vunpack.c.l.s8.bf16 %v474
        %v499 = vunpack.c.l.s8.bf16 %v475
        %v500 = vunpack.c.h.s8.bf16 %v472
        %v501 = vunpack.c.h.s8.bf16 %v473
        %v502 = vunpack.c.h.s8.bf16 %v474
        %v503 = vunpack.c.h.s8.bf16 %v475
        %v504 = vunpack.c.l.s8.bf16 %v476
        %v505 = vunpack.c.l.s8.bf16 %v477
        %v506 = vunpack.c.l.s8.bf16 %v478
        %v507 = vunpack.c.l.s8.bf16 %v479
        %v508 = vunpack.c.h.s8.bf16 %v476
        %v509 = vunpack.c.h.s8.bf16 %v477
        %v510 = vunpack.c.h.s8.bf16 %v478
        %v511 = vunpack.c.h.s8.bf16 %v479
        %v512 = vld [vmem:[#allocation3] sm:$0xf]
        %v513 = vld [vmem:[#allocation3 + $0x4] sm:$0xf]
        %v514 = vld [vmem:[#allocation3 + $0x8] sm:$0xf]
        %v515 = vld [vmem:[#allocation3 + $0xc] sm:$0xf]
        %v516 = vld [vmem:[#allocation3 + $0x10] sm:$0xf]
        %v517 = vld [vmem:[#allocation3 + $0x14] sm:$0xf]
        %v518 = vld [vmem:[#allocation3 + $0x18] sm:$0xf]
        %v519 = vld [vmem:[#allocation3 + $0x1c] sm:$0xf]
        %v520 = vld [vmem:[#allocation3 + $0x20] sm:$0xf]
        %v521 = vld [vmem:[#allocation3 + $0x24] sm:$0xf]
        %v522 = vld [vmem:[#allocation3 + $0x28] sm:$0xf]
        %v523 = vld [vmem:[#allocation3 + $0x2c] sm:$0xf]
        %v524 = vld [vmem:[#allocation3 + $0x30] sm:$0xf]
        %v525 = vld [vmem:[#allocation3 + $0x34] sm:$0xf]
        %v526 = vld [vmem:[#allocation3 + $0x38] sm:$0xf]
        %v527 = vld [vmem:[#allocation3 + $0x3c] sm:$0xf]
        %v528 = vld [vmem:[#allocation3 + $0x40] sm:$0xf]
        %v529 = vld [vmem:[#allocation3 + $0x44] sm:$0xf]
        %v530 = vld [vmem:[#allocation3 + $0x48] sm:$0xf]
        %v531 = vld [vmem:[#allocation3 + $0x4c] sm:$0xf]
        %v532 = vld [vmem:[#allocation3 + $0x50] sm:$0xf]
        %v533 = vld [vmem:[#allocation3 + $0x54] sm:$0xf]
        %v534 = vld [vmem:[#allocation3 + $0x58] sm:$0xf]
        %v535 = vld [vmem:[#allocation3 + $0x5c] sm:$0xf]
        %v536 = vld [vmem:[#allocation3 + $0x60] sm:$0xf]
        %v537 = vld [vmem:[#allocation3 + $0x64] sm:$0xf]
        %v538 = vld [vmem:[#allocation3 + $0x68] sm:$0xf]
        %v539 = vld [vmem:[#allocation3 + $0x6c] sm:$0xf]
        %v540 = vld [vmem:[#allocation3 + $0x70] sm:$0xf]
        %v541 = vld [vmem:[#allocation3 + $0x74] sm:$0xf]
        %v542 = vld [vmem:[#allocation3 + $0x78] sm:$0xf]
        %v543 = vld [vmem:[#allocation3 + $0x7c] sm:$0xf]
        %v544 = vld [vmem:[#allocation3 + $0x80] sm:$0xf]
        %v545 = vld [vmem:[#allocation3 + $0x84] sm:$0xf]
        %v546 = vld [vmem:[#allocation3 + $0x88] sm:$0xf]
        %v547 = vld [vmem:[#allocation3 + $0x8c] sm:$0xf]
        %v548 = vld [vmem:[#allocation3 + $0x90] sm:$0xf]
        %v549 = vld [vmem:[#allocation3 + $0x94] sm:$0xf]
        %v550 = vld [vmem:[#allocation3 + $0x98] sm:$0xf]
        %v551 = vld [vmem:[#allocation3 + $0x9c] sm:$0xf]
        %v552 = vld [vmem:[#allocation3 + $0xa0] sm:$0xf]
        %v553 = vld [vmem:[#allocation3 + $0xa4] sm:$0xf]
        %v554 = vld [vmem:[#allocation3 + $0xa8] sm:$0xf]
        %v555 = vld [vmem:[#allocation3 + $0xac] sm:$0xf]
        %v556 = vld [vmem:[#allocation3 + $0xb0] sm:$0xf]
        %v557 = vld [vmem:[#allocation3 + $0xb4] sm:$0xf]
        %v558 = vld [vmem:[#allocation3 + $0xb8] sm:$0xf]
        %v559 = vld [vmem:[#allocation3 + $0xbc] sm:$0xf]
        %v560 = vld [vmem:[#allocation3 + $0xc0] sm:$0xf]
        %v561 = vld [vmem:[#allocation3 + $0xc4] sm:$0xf]
        %v562 = vld [vmem:[#allocation3 + $0xc8] sm:$0xf]
        %v563 = vld [vmem:[#allocation3 + $0xcc] sm:$0xf]
        %v564 = vld [vmem:[#allocation3 + $0xd0] sm:$0xf]
        %v565 = vld [vmem:[#allocation3 + $0xd4] sm:$0xf]
        %v566 = vld [vmem:[#allocation3 + $0xd8] sm:$0xf]
        %v567 = vld [vmem:[#allocation3 + $0xdc] sm:$0xf]
        %v568 = vld [vmem:[#allocation3 + $0xe0] sm:$0xf]
        %v569 = vld [vmem:[#allocation3 + $0xe4] sm:$0xf]
        %v570 = vld [vmem:[#allocation3 + $0xe8] sm:$0xf]
        %v571 = vld [vmem:[#allocation3 + $0xec] sm:$0xf]
        %v572 = vld [vmem:[#allocation3 + $0xf0] sm:$0xf]
        %v573 = vld [vmem:[#allocation3 + $0xf4] sm:$0xf]
        %v574 = vld [vmem:[#allocation3 + $0xf8] sm:$0xf]
        %v575 = vld [vmem:[#allocation3 + $0xfc] sm:$0xf]
        %v640 = vunpack.c.l.b16 %v512
        %v641 = vunpack.c.l.b16 %v513
        %v642 = vunpack.c.l.b16 %v514
        %v643 = vunpack.c.l.b16 %v515
        %v644 = vunpack.c.l.b16 %v516
        %v645 = vunpack.c.l.b16 %v517
        %v646 = vunpack.c.l.b16 %v518
        %v647 = vunpack.c.l.b16 %v519
        %v648 = vunpack.c.l.b16 %v520
        %v649 = vunpack.c.l.b16 %v521
        %v650 = vunpack.c.l.b16 %v522
        %v651 = vunpack.c.l.b16 %v523
        %v652 = vunpack.c.l.b16 %v524
        %v653 = vunpack.c.l.b16 %v525
        %v654 = vunpack.c.l.b16 %v526
        %v655 = vunpack.c.l.b16 %v527
        %v656 = vunpack.c.l.b16 %v528
        %v657 = vunpack.c.l.b16 %v529
        %v658 = vunpack.c.l.b16 %v530
        %v659 = vunpack.c.l.b16 %v531
        %v660 = vunpack.c.l.b16 %v532
        %v661 = vunpack.c.l.b16 %v533
        %v662 = vunpack.c.l.b16 %v534
        %v663 = vunpack.c.l.b16 %v535
        %v664 = vunpack.c.l.b16 %v536
        %v665 = vunpack.c.l.b16 %v537
        %v666 = vunpack.c.l.b16 %v538
        %v667 = vunpack.c.l.b16 %v539
        %v668 = vunpack.c.l.b16 %v540
        %v669 = vunpack.c.l.b16 %v541
        %v670 = vunpack.c.l.b16 %v542
        %v671 = vunpack.c.l.b16 %v543
        %v672 = vunpack.c.l.b16 %v544
        %v673 = vunpack.c.l.b16 %v545
        %v674 = vunpack.c.l.b16 %v546
        %v675 = vunpack.c.l.b16 %v547
        %v676 = vunpack.c.l.b16 %v548
        %v677 = vunpack.c.l.b16 %v549
        %v678 = vunpack.c.l.b16 %v550
        %v679 = vunpack.c.l.b16 %v551
        %v680 = vunpack.c.l.b16 %v552
        %v681 = vunpack.c.l.b16 %v553
        %v682 = vunpack.c.l.b16 %v554
        %v683 = vunpack.c.l.b16 %v555
        %v684 = vunpack.c.l.b16 %v556
        %v685 = vunpack.c.l.b16 %v557
        %v686 = vunpack.c.l.b16 %v558
        %v687 = vunpack.c.l.b16 %v559
        %v688 = vunpack.c.l.b16 %v560
        %v689 = vunpack.c.l.b16 %v561
        %v690 = vunpack.c.l.b16 %v562
        %v691 = vunpack.c.l.b16 %v563
        %v692 = vunpack.c.l.b16 %v564
        %v693 = vunpack.c.l.b16 %v565
        %v694 = vunpack.c.l.b16 %v566
        %v695 = vunpack.c.l.b16 %v567
        %v696 = vunpack.c.l.b16 %v568
        %v697 = vunpack.c.l.b16 %v569
        %v698 = vunpack.c.l.b16 %v570
        %v699 = vunpack.c.l.b16 %v571
        %v700 = vunpack.c.l.b16 %v572
        %v701 = vunpack.c.l.b16 %v573
        %v702 = vunpack.c.l.b16 %v574
        %v703 = vunpack.c.l.b16 %v575
        %v704 = vpack.c.b16 %v641, %v640
        %v705 = vpack.c.b16 %v643, %v642
        %v706 = vpack.c.b16 %v645, %v644
        %v707 = vpack.c.b16 %v647, %v646
        %v708 = vpack.c.b16 %v649, %v648
        %v709 = vpack.c.b16 %v651, %v650
        %v710 = vpack.c.b16 %v653, %v652
        %v711 = vpack.c.b16 %v655, %v654
        %v712 = vpack.c.b16 %v657, %v656
        %v713 = vpack.c.b16 %v659, %v658
        %v714 = vpack.c.b16 %v661, %v660
        %v715 = vpack.c.b16 %v663, %v662
        %v716 = vpack.c.b16 %v665, %v664
        %v717 = vpack.c.b16 %v667, %v666
        %v718 = vpack.c.b16 %v669, %v668
        %v719 = vpack.c.b16 %v671, %v670
        %v720 = vpack.c.b16 %v673, %v672
        %v721 = vpack.c.b16 %v675, %v674
        %v722 = vpack.c.b16 %v677, %v676
        %v723 = vpack.c.b16 %v679, %v678
        %v724 = vpack.c.b16 %v681, %v680
        %v725 = vpack.c.b16 %v683, %v682
        %v726 = vpack.c.b16 %v685, %v684
        %v727 = vpack.c.b16 %v687, %v686
        %v728 = vpack.c.b16 %v689, %v688
        %v729 = vpack.c.b16 %v691, %v690
        %v730 = vpack.c.b16 %v693, %v692
        %v731 = vpack.c.b16 %v695, %v694
        %v732 = vpack.c.b16 %v697, %v696
        %v733 = vpack.c.b16 %v699, %v698
        %v734 = vpack.c.b16 %v701, %v700
        %v735 = vpack.c.b16 %v703, %v702
        %768 = vmatprep.subr.bf16.mxu0 0
        %769 = vmatpush1.bf16.msra.mxu0 %v704
        %770 = vmatprep.subr.bf16.mxu0 0
        %771 = vmatpush1.bf16.msra.mxu0 %v705
        %772 = vmatprep.subr.bf16.mxu0 0
        %773 = vmatpush1.bf16.msra.mxu0 %v706
        %774 = vmatprep.subr.bf16.mxu0 0
        %775 = vmatpush1.bf16.msra.mxu0 %v707
        %776 = vmatprep.subr.bf16.mxu0 0
        %777 = vmatpush1.bf16.msra.mxu0 %v708
        %778 = vmatprep.subr.bf16.mxu0 0
        %779 = vmatpush1.bf16.msra.mxu0 %v709
        %780 = vmatprep.subr.bf16.mxu0 0
        %781 = vmatpush1.bf16.msra.mxu0 %v710
        %782 = vmatprep.subr.bf16.mxu0 0
        %783 = vmatpush1.bf16.msra.mxu0 %v711
        %784 = vmatprep.subr.bf16.mxu0 0
        %785 = vmatpush1.bf16.msra.mxu0 %v712
        %786 = vmatprep.subr.bf16.mxu0 0
        %787 = vmatpush1.bf16.msra.mxu0 %v713
        %788 = vmatprep.subr.bf16.mxu0 0
        %789 = vmatpush1.bf16.msra.mxu0 %v714
        %790 = vmatprep.subr.bf16.mxu0 0
        %791 = vmatpush1.bf16.msra.mxu0 %v715
        %792 = vmatprep.subr.bf16.mxu0 0
        %793 = vmatpush1.bf16.msra.mxu0 %v716
        %794 = vmatprep.subr.bf16.mxu0 0
        %795 = vmatpush1.bf16.msra.mxu0 %v717
        %796 = vmatprep.subr.bf16.mxu0 0
        %797 = vmatpush1.bf16.msra.mxu0 %v718
        %798 = vmatprep.subr.bf16.mxu0 0
        %799 = vmatpush1.bf16.msra.mxu0 %v719
        %800 = vmatprep.mubr.bf16.mxu0 %v481
        %801 = vmatmul.mubr.bf16.gmra.mrb[0].mxu0 %v480
        %v802 = vpop.f32.mrb[0].mxu0
        %v803 = vadd.f32 0.0, %v802
        %v804 = vpop.f32.mrb[0].mxu0
        %v805 = vpop.f32.mrb[0].mxu0
        %v806 = vadd.f32 0.0, %v805
        %v807 = vpop.f32.mrb[0].mxu0
        %808 = vmatprep.mubr.bf16.mxu0 %v485
        %809 = vmatmul.mubr.bf16.gmra.mrb[0].mxu0 %v484
        %v810 = vpop.f32.mrb[0].mxu0
        %v811 = vadd.f32 0.0, %v810
        %v812 = vpop.f32.mrb[0].mxu0
        %v813 = vpop.f32.mrb[0].mxu0
        %v814 = vadd.f32 0.0, %v813
        %v815 = vpop.f32.mrb[0].mxu0
        %816 = vmatprep.mubr.bf16.mxu0 %v489
        %817 = vmatmul.mubr.bf16.gmra.mrb[0].mxu0 %v488
        %v818 = vpop.f32.mrb[0].mxu0
        %v819 = vadd.f32 0.0, %v818
        %v820 = vpop.f32.mrb[0].mxu0
        %v821 = vpop.f32.mrb[0].mxu0
        %v822 = vadd.f32 0.0, %v821
        %v823 = vpop.f32.mrb[0].mxu0
        %824 = vmatprep.mubr.bf16.mxu0 %v493
        %825 = vmatmul.mubr.bf16.gmra.mrb[0].mxu0 %v492
        %v826 = vpop.f32.mrb[0].mxu0
        %v827 = vadd.f32 0.0, %v826
        %v828 = vpop.f32.mrb[0].mxu0
        %v829 = vpop.f32.mrb[0].mxu0
        %v830 = vadd.f32 0.0, %v829
        %v831 = vpop.f32.mrb[0].mxu0
        %832 = vmatprep.mubr.bf16.mxu0 %v497
        %833 = vmatmul.mubr.bf16.gmra.mrb[0].mxu0 %v496
        %v834 = vpop.f32.mrb[0].mxu0
        %v835 = vadd.f32 0.0, %v834
        %v836 = vpop.f32.mrb[0].mxu0
        %v837 = vpop.f32.mrb[0].mxu0
        %v838 = vadd.f32 0.0, %v837
        %v839 = vpop.f32.mrb[0].mxu0
        %840 = vmatprep.mubr.bf16.mxu0 %v501
        %841 = vmatmul.mubr.bf16.gmra.mrb[0].mxu0 %v500
        %v842 = vpop.f32.mrb[0].mxu0
        %v843 = vadd.f32 0.0, %v842
        %v844 = vpop.f32.mrb[0].mxu0
        %v845 = vpop.f32.mrb[0].mxu0
        %v846 = vadd.f32 0.0, %v845
        %v847 = vpop.f32.mrb[0].mxu0
        %848 = vmatprep.mubr.bf16.mxu0 %v505
        %849 = vmatmul.mubr.bf16.gmra.mrb[0].mxu0 %v504
        %v850 = vpop.f32.mrb[0].mxu0
        %v851 = vadd.f32 0.0, %v850
        %v852 = vpop.f32.mrb[0].mxu0
        %v853 = vpop.f32.mrb[0].mxu0
        %v854 = vadd.f32 0.0, %v853
        %v855 = vpop.f32.mrb[0].mxu0
        %856 = vmatprep.mubr.bf16.mxu0 %v509
        %857 = vmatmul.mubr.bf16.gmra.mrb[0].mxu0 %v508
        %v858 = vpop.f32.mrb[0].mxu0
        %v859 = vadd.f32 0.0, %v858
        %v860 = vpop.f32.mrb[0].mxu0
        %v861 = vpop.f32.mrb[0].mxu0
        %v862 = vadd.f32 0.0, %v861
        %v863 = vpop.f32.mrb[0].mxu0
        %864 = vdwg.mxu0
        %865 = vmatprep.subr.bf16.mxu0 0
        %866 = vmatpush1.bf16.msra.mxu0 %v720
        %867 = vmatprep.subr.bf16.mxu0 0
        %868 = vmatpush1.bf16.msra.mxu0 %v721
        %869 = vmatprep.subr.bf16.mxu0 0
        %870 = vmatpush1.bf16.msra.mxu0 %v722
        %871 = vmatprep.subr.bf16.mxu0 0
        %872 = vmatpush1.bf16.msra.mxu0 %v723
        %873 = vmatprep.subr.bf16.mxu0 0
        %874 = vmatpush1.bf16.msra.mxu0 %v724
        %875 = vmatprep.subr.bf16.mxu0 0
        %876 = vmatpush1.bf16.msra.mxu0 %v725
        %877 = vmatprep.subr.bf16.mxu0 0
        %878 = vmatpush1.bf16.msra.mxu0 %v726
        %879 = vmatprep.subr.bf16.mxu0 0
        %880 = vmatpush1.bf16.msra.mxu0 %v727
        %881 = vmatprep.subr.bf16.mxu0 0
        %882 = vmatpush1.bf16.msra.mxu0 %v728
        %883 = vmatprep.subr.bf16.mxu0 0
        %884 = vmatpush1.bf16.msra.mxu0 %v729
        %885 = vmatprep.subr.bf16.mxu0 0
        %886 = vmatpush1.bf16.msra.mxu0 %v730
        %887 = vmatprep.subr.bf16.mxu0 0
        %888 = vmatpush1.bf16.msra.mxu0 %v731
        %889 = vmatprep.subr.bf16.mxu0 0
        %890 = vmatpush1.bf16.msra.mxu0 %v732
        %891 = vmatprep.subr.bf16.mxu0 0
        %892 = vmatpush1.bf16.msra.mxu0 %v733
        %893 = vmatprep.subr.bf16.mxu0 0
        %894 = vmatpush1.bf16.msra.mxu0 %v734
        %895 = vmatprep.subr.bf16.mxu0 0
        %896 = vmatpush1.bf16.msra.mxu0 %v735
        %897 = vmatprep.mubr.bf16.mxu0 %v483
        %898 = vmatmul.mubr.bf16.gmra.mrb[0].mxu0 %v482
        %v899 = vpop.f32.mrb[0].mxu0
        %v900 = vadd.f32 %v803, %v899
        %v901 = vpop.f32.mrb[0].mxu0
        %v902 = vpop.f32.mrb[0].mxu0
        %v903 = vadd.f32 %v806, %v902
        %v904 = vpop.f32.mrb[0].mxu0
        %905 = vmatprep.mubr.bf16.mxu0 %v487
        %906 = vmatmul.mubr.bf16.gmra.mrb[0].mxu0 %v486
        %v907 = vpop.f32.mrb[0].mxu0
        %v908 = vadd.f32 %v811, %v907
        %v909 = vpop.f32.mrb[0].mxu0
        %v910 = vpop.f32.mrb[0].mxu0
        %v911 = vadd.f32 %v814, %v910
        %v912 = vpop.f32.mrb[0].mxu0
        %913 = vmatprep.mubr.bf16.mxu0 %v491
        %914 = vmatmul.mubr.bf16.gmra.mrb[0].mxu0 %v490
        %v915 = vpop.f32.mrb[0].mxu0
        %v916 = vadd.f32 %v819, %v915
        %v917 = vpop.f32.mrb[0].mxu0
        %v918 = vpop.f32.mrb[0].mxu0
        %v919 = vadd.f32 %v822, %v918
        %v920 = vpop.f32.mrb[0].mxu0
        %921 = vmatprep.mubr.bf16.mxu0 %v495
        %922 = vmatmul.mubr.bf16.gmra.mrb[0].mxu0 %v494
        %v923 = vpop.f32.mrb[0].mxu0
        %v924 = vadd.f32 %v827, %v923
        %v925 = vpop.f32.mrb[0].mxu0
        %v926 = vpop.f32.mrb[0].mxu0
        %v927 = vadd.f32 %v830, %v926
        %v928 = vpop.f32.mrb[0].mxu0
        %929 = vmatprep.mubr.bf16.mxu0 %v499
        %930 = vmatmul.mubr.bf16.gmra.mrb[0].mxu0 %v498
        %v931 = vpop.f32.mrb[0].mxu0
        %v932 = vadd.f32 %v835, %v931
        %v933 = vpop.f32.mrb[0].mxu0
        %v934 = vpop.f32.mrb[0].mxu0
        %v935 = vadd.f32 %v838, %v934
        %v936 = vpop.f32.mrb[0].mxu0
        %937 = vmatprep.mubr.bf16.mxu0 %v503
        %938 = vmatmul.mubr.bf16.gmra.mrb[0].mxu0 %v502
        %v939 = vpop.f32.mrb[0].mxu0
        %v940 = vadd.f32 %v843, %v939
        %v941 = vpop.f32.mrb[0].mxu0
        %v942 = vpop.f32.mrb[0].mxu0
        %v943 = vadd.f32 %v846, %v942
        %v944 = vpop.f32.mrb[0].mxu0
        %945 = vmatprep.mubr.bf16.mxu0 %v507
        %946 = vmatmul.mubr.bf16.gmra.mrb[0].mxu0 %v506
        %v947 = vpop.f32.mrb[0].mxu0
        %v948 = vadd.f32 %v851, %v947
        %v949 = vpop.f32.mrb[0].mxu0
        %v950 = vpop.f32.mrb[0].mxu0
        %v951 = vadd.f32 %v854, %v950
        %v952 = vpop.f32.mrb[0].mxu0
        %953 = vmatprep.mubr.bf16.mxu0 %v511
        %954 = vmatmul.mubr.bf16.gmra.mrb[0].mxu0 %v510
        %v955 = vpop.f32.mrb[0].mxu0
        %v956 = vadd.f32 %v859, %v955
        %v957 = vpop.f32.mrb[0].mxu0
        %v958 = vpop.f32.mrb[0].mxu0
        %v959 = vadd.f32 %v862, %v958
        %v960 = vpop.f32.mrb[0].mxu0
        %961 = vdwg.mxu0
        %v962 = vadd.f32 %v448, %v900
        %v963 = vadd.f32 %v449, %v903
        %v964 = vadd.f32 %v450, %v908
        %v965 = vadd.f32 %v451, %v911
        %v966 = vadd.f32 %v452, %v916
        %v967 = vadd.f32 %v453, %v919
        %v968 = vadd.f32 %v454, %v924
        %v969 = vadd.f32 %v455, %v927
        %v970 = vadd.f32 %v456, %v932
        %v971 = vadd.f32 %v457, %v935
        %v972 = vadd.f32 %v458, %v940
        %v973 = vadd.f32 %v459, %v943
        %v974 = vadd.f32 %v460, %v948
        %v975 = vadd.f32 %v461, %v951
        %v976 = vadd.f32 %v462, %v956
        %v977 = vadd.f32 %v463, %v959
        %978 = vst [vmem:[#allocation2] sm:$0xff] %v962
        %979 = vst [vmem:[#allocation2 + $0x8] sm:$0xff] %v963
        %980 = vst [vmem:[#allocation2 + $0x10] sm:$0xff] %v964
        %981 = vst [vmem:[#allocation2 + $0x18] sm:$0xff] %v965
        %982 = vst [vmem:[#allocation2 + $0x20] sm:$0xff] %v966
        %983 = vst [vmem:[#allocation2 + $0x28] sm:$0xff] %v967
        %984 = vst [vmem:[#allocation2 + $0x30] sm:$0xff] %v968
        %985 = vst [vmem:[#allocation2 + $0x38] sm:$0xff] %v969
        %986 = vst [vmem:[#allocation2 + $0x40] sm:$0xff] %v970
        %987 = vst [vmem:[#allocation2 + $0x48] sm:$0xff] %v971
        %988 = vst [vmem:[#allocation2 + $0x50] sm:$0xff] %v972
        %989 = vst [vmem:[#allocation2 + $0x58] sm:$0xff] %v973
        %990 = vst [vmem:[#allocation2 + $0x60] sm:$0xff] %v974
        %991 = vst [vmem:[#allocation2 + $0x68] sm:$0xff] %v975
        %992 = vst [vmem:[#allocation2 + $0x70] sm:$0xff] %v976
        %993 = vst [vmem:[#allocation2 + $0x78] sm:$0xff] %v977
        // Predicated region
        $region69: #{tpu_custom_call.1} parent=47 // pred_check
          %p994 = pneg %p428
        $region70: #{tpu_custom_call.1} parent=47 // pred_check_branch
          %996 = sbr.rel (%p994) target = $region72
        $region71: #{tpu_custom_call.1} parent=47 // pred_region
          %v997 = vld [vmem:[#allocation2] sm:$0xff]
          %v998 = vld [vmem:[#allocation2 + $0x8] sm:$0xff]
          %v999 = vld [vmem:[#allocation2 + $0x10] sm:$0xff]
          %v1000 = vld [vmem:[#allocation2 + $0x18] sm:$0xff]
          %v1001 = vld [vmem:[#allocation2 + $0x20] sm:$0xff]
          %v1002 = vld [vmem:[#allocation2 + $0x28] sm:$0xff]
          %v1003 = vld [vmem:[#allocation2 + $0x30] sm:$0xff]
          %v1004 = vld [vmem:[#allocation2 + $0x38] sm:$0xff]
          %v1005 = vld [vmem:[#allocation2 + $0x40] sm:$0xff]
          %v1006 = vld [vmem:[#allocation2 + $0x48] sm:$0xff]
          %v1007 = vld [vmem:[#allocation2 + $0x50] sm:$0xff]
          %v1008 = vld [vmem:[#allocation2 + $0x58] sm:$0xff]
          %v1009 = vld [vmem:[#allocation2 + $0x60] sm:$0xff]
          %v1010 = vld [vmem:[#allocation2 + $0x68] sm:$0xff]
          %v1011 = vld [vmem:[#allocation2 + $0x70] sm:$0xff]
          %v1012 = vld [vmem:[#allocation2 + $0x78] sm:$0xff]
          %v1013 = vld [vmem:[%s424] sm:$0xff]
          %v1014 = vld [vmem:[%s424 + $0x8] sm:$0xff]
          %v1015 = vld [vmem:[%s424 + $0x10] sm:$0xff]
          %v1016 = vld [vmem:[%s424 + $0x18] sm:$0xff]
          %v1017 = vld [vmem:[%s424 + $0x20] sm:$0xff]
          %v1018 = vld [vmem:[%s424 + $0x28] sm:$0xff]
          %v1019 = vld [vmem:[%s424 + $0x30] sm:$0xff]
          %v1020 = vld [vmem:[%s424 + $0x38] sm:$0xff]
          %v1021 = vld [vmem:[%s424 + $0x40] sm:$0xff]
          %v1022 = vld [vmem:[%s424 + $0x48] sm:$0xff]
          %v1023 = vld [vmem:[%s424 + $0x50] sm:$0xff]
          %v1024 = vld [vmem:[%s424 + $0x58] sm:$0xff]
          %v1025 = vld [vmem:[%s424 + $0x60] sm:$0xff]
          %v1026 = vld [vmem:[%s424 + $0x68] sm:$0xff]
          %v1027 = vld [vmem:[%s424 + $0x70] sm:$0xff]
          %v1028 = vld [vmem:[%s424 + $0x78] sm:$0xff]
          %1030 = vset.pattern.permute.xlu0 0
          %1031 = vperm.xlu0 %1030, %v1013
          %v1032 = vpop.permute.xlu0 %1031
          %1035 = vset.pattern.permute.xlu0 0
          %1036 = vperm.xlu0 %1035, %v1014
          %v1037 = vpop.permute.xlu0 %1036
          %1040 = vset.pattern.permute.xlu0 0
          %1041 = vperm.xlu0 %1040, %v1015
          %v1042 = vpop.permute.xlu0 %1041
          %1045 = vset.pattern.permute.xlu0 0
          %1046 = vperm.xlu0 %1045, %v1016
          %v1047 = vpop.permute.xlu0 %1046
          %1050 = vset.pattern.permute.xlu0 0
          %1051 = vperm.xlu0 %1050, %v1017
          %v1052 = vpop.permute.xlu0 %1051
          %1055 = vset.pattern.permute.xlu0 0
          %1056 = vperm.xlu0 %1055, %v1018
          %v1057 = vpop.permute.xlu0 %1056
          %1060 = vset.pattern.permute.xlu0 0
          %1061 = vperm.xlu0 %1060, %v1019
          %v1062 = vpop.permute.xlu0 %1061
          %1065 = vset.pattern.permute.xlu0 0
          %1066 = vperm.xlu0 %1065, %v1020
          %v1067 = vpop.permute.xlu0 %1066
          %1070 = vset.pattern.permute.xlu0 0
          %1071 = vperm.xlu0 %1070, %v1021
          %v1072 = vpop.permute.xlu0 %1071
          %1075 = vset.pattern.permute.xlu0 0
          %1076 = vperm.xlu0 %1075, %v1022
          %v1077 = vpop.permute.xlu0 %1076
          %1080 = vset.pattern.permute.xlu0 0
          %1081 = vperm.xlu0 %1080, %v1023
          %v1082 = vpop.permute.xlu0 %1081
          %1085 = vset.pattern.permute.xlu0 0
          %1086 = vperm.xlu0 %1085, %v1024
          %v1087 = vpop.permute.xlu0 %1086
          %1090 = vset.pattern.permute.xlu0 0
          %1091 = vperm.xlu0 %1090, %v1025
          %v1092 = vpop.permute.xlu0 %1091
          %1095 = vset.pattern.permute.xlu0 0
          %1096 = vperm.xlu0 %1095, %v1026
          %v1097 = vpop.permute.xlu0 %1096
          %1100 = vset.pattern.permute.xlu0 0
          %1101 = vperm.xlu0 %1100, %v1027
          %v1102 = vpop.permute.xlu0 %1101
          %1105 = vset.pattern.permute.xlu0 0
          %1106 = vperm.xlu0 %1105, %v1028
          %v1107 = vpop.permute.xlu0 %1106
          %v1109 = vmul.f32 %v997, %v1032
          %v1110 = vmul.f32 %v998, %v1037
          %v1111 = vmul.f32 %v999, %v1042
          %v1112 = vmul.f32 %v1000, %v1047
          %v1113 = vmul.f32 %v1001, %v1052
          %v1114 = vmul.f32 %v1002, %v1057
          %v1115 = vmul.f32 %v1003, %v1062
          %v1116 = vmul.f32 %v1004, %v1067
          %v1117 = vmul.f32 %v1005, %v1072
          %v1118 = vmul.f32 %v1006, %v1077
          %v1119 = vmul.f32 %v1007, %v1082
          %v1120 = vmul.f32 %v1008, %v1087
          %v1121 = vmul.f32 %v1009, %v1092
          %v1122 = vmul.f32 %v1010, %v1097
          %v1123 = vmul.f32 %v1011, %v1102
          %v1124 = vmul.f32 %v1012, %v1107
          %v1125 = vpack.c.bf16 %v1110, %v1109
          %v1126 = vpack.c.bf16 %v1112, %v1111
          %v1127 = vpack.c.bf16 %v1114, %v1113
          %v1128 = vpack.c.bf16 %v1116, %v1115
          %v1129 = vpack.c.bf16 %v1118, %v1117
          %v1130 = vpack.c.bf16 %v1120, %v1119
          %v1131 = vpack.c.bf16 %v1122, %v1121
          %v1132 = vpack.c.bf16 %v1124, %v1123
          %v1133 = vld [vmem:[#allocation8] sm:$0xf]
          %v1134 = vld [vmem:[#allocation8 + $0x4] sm:$0xf]
          %v1135 = vld [vmem:[#allocation8 + $0x8] sm:$0xf]
          %v1136 = vld [vmem:[#allocation8 + $0xc] sm:$0xf]
          %v1137 = vld [vmem:[#allocation8 + $0x10] sm:$0xf]
          %v1138 = vld [vmem:[#allocation8 + $0x14] sm:$0xf]
          %v1139 = vld [vmem:[#allocation8 + $0x18] sm:$0xf]
          %v1140 = vld [vmem:[#allocation8 + $0x1c] sm:$0xf]
          %v1141 = vld [vmem:[#allocation8 + $0x20] sm:$0xf]
          %v1142 = vld [vmem:[#allocation8 + $0x24] sm:$0xf]
          %v1143 = vld [vmem:[#allocation8 + $0x28] sm:$0xf]
          %v1144 = vld [vmem:[#allocation8 + $0x2c] sm:$0xf]
          %v1145 = vld [vmem:[#allocation8 + $0x30] sm:$0xf]
          %v1146 = vld [vmem:[#allocation8 + $0x34] sm:$0xf]
          %v1147 = vld [vmem:[#allocation8 + $0x38] sm:$0xf]
          %v1148 = vld [vmem:[#allocation8 + $0x3c] sm:$0xf]
          %v1149 = vld [vmem:[%s5] sm:$0x1]
          %v1151 = vlaneseq
          %v1152 = vshrl.u32 %v1151, 7
          %v1153 = vsub.s32 0, %v1152
          %v1154 = vrot.slane %v1149, %v1153
          %v1172 = vunpack.c.l.b16 %v1133
          %v1173 = vunpack.c.l.b16 %v1134
          %v1174 = vunpack.c.l.b16 %v1135
          %v1175 = vunpack.c.l.b16 %v1136
          %v1176 = vunpack.c.l.b16 %v1137
          %v1177 = vunpack.c.l.b16 %v1138
          %v1178 = vunpack.c.l.b16 %v1139
          %v1179 = vunpack.c.l.b16 %v1140
          %v1180 = vunpack.c.l.b16 %v1141
          %v1181 = vunpack.c.l.b16 %v1142
          %v1182 = vunpack.c.l.b16 %v1143
          %v1183 = vunpack.c.l.b16 %v1144
          %v1184 = vunpack.c.l.b16 %v1145
          %v1185 = vunpack.c.l.b16 %v1146
          %v1186 = vunpack.c.l.b16 %v1147
          %v1187 = vunpack.c.l.b16 %v1148
          %v1188 = vpack.c.b16 %v1173, %v1172
          %v1189 = vpack.c.b16 %v1175, %v1174
          %v1190 = vpack.c.b16 %v1177, %v1176
          %v1191 = vpack.c.b16 %v1179, %v1178
          %v1192 = vpack.c.b16 %v1181, %v1180
          %v1193 = vpack.c.b16 %v1183, %v1182
          %v1194 = vpack.c.b16 %v1185, %v1184
          %v1195 = vpack.c.b16 %v1187, %v1186
          %1204 = vmatprep.subr.bf16.mxu0 0
          %1205 = vmatpush1.bf16.msra.mxu0 %v1188
          %1206 = vmatprep.subr.bf16.mxu0 0
          %1207 = vmatpush1.bf16.msra.mxu0 %v1189
          %1208 = vmatprep.subr.bf16.mxu0 0
          %1209 = vmatpush1.bf16.msra.mxu0 %v1190
          %1210 = vmatprep.subr.bf16.mxu0 0
          %1211 = vmatpush1.bf16.msra.mxu0 %v1191
          %1212 = vmatprep.subr.bf16.mxu0 0
          %1213 = vmatpush1.bf16.msra.mxu0 %v1192
          %1214 = vmatprep.subr.bf16.mxu0 0
          %1215 = vmatpush1.bf16.msra.mxu0 %v1193
          %1216 = vmatprep.subr.bf16.mxu0 0
          %1217 = vmatpush1.bf16.msra.mxu0 %v1194
          %1218 = vmatprep.subr.bf16.mxu0 0
          %1219 = vmatpush1.bf16.msra.mxu0 %v1195
          %1220 = vmatprep.subr.bf16.mxu0 0
          %1221 = vmatpush1.bf16.msra.mxu0 0
          %1222 = vmatprep.subr.bf16.mxu0 0
          %1223 = vmatpush1.bf16.msra.mxu0 0
          %1224 = vmatprep.subr.bf16.mxu0 0
          %1225 = vmatpush1.bf16.msra.mxu0 0
          %1226 = vmatprep.subr.bf16.mxu0 0
          %1227 = vmatpush1.bf16.msra.mxu0 0
          %1228 = vmatprep.subr.bf16.mxu0 0
          %1229 = vmatpush1.bf16.msra.mxu0 0
          %1230 = vmatprep.subr.bf16.mxu0 0
          %1231 = vmatpush1.bf16.msra.mxu0 0
          %1232 = vmatprep.subr.bf16.mxu0 0
          %1233 = vmatpush1.bf16.msra.mxu0 0
          %1234 = vmatprep.subr.bf16.mxu0 0
          %1235 = vmatpush1.bf16.msra.mxu0 0
          %1236 = vmatprep.mubr.bf16.mxu0 0
          %1237 = vmatmul.mubr.bf16.gmra.mrb[0].mxu0 %v1125
          %v1238 = vpop.f32.mrb[0].mxu0
          %v1239 = vadd.f32 %v1154, %v1238
          %v1240 = vpop.f32.mrb[0].mxu0
          %v1241 = vpop.f32.mrb[0].mxu0
          %v1242 = vadd.f32 %v1154, %v1241
          %v1243 = vpop.f32.mrb[0].mxu0
          %1244 = vmatprep.mubr.bf16.mxu0 0
          %1245 = vmatmul.mubr.bf16.gmra.mrb[0].mxu0 %v1126
          %v1246 = vpop.f32.mrb[0].mxu0
          %v1247 = vadd.f32 %v1154, %v1246
          %v1248 = vpop.f32.mrb[0].mxu0
          %v1249 = vpop.f32.mrb[0].mxu0
          %v1250 = vadd.f32 %v1154, %v1249
          %v1251 = vpop.f32.mrb[0].mxu0
          %1252 = vmatprep.mubr.bf16.mxu0 0
          %1253 = vmatmul.mubr.bf16.gmra.mrb[0].mxu0 %v1127
          %v1254 = vpop.f32.mrb[0].mxu0
          %v1255 = vadd.f32 %v1154, %v1254
          %v1256 = vpop.f32.mrb[0].mxu0
          %v1257 = vpop.f32.mrb[0].mxu0
          %v1258 = vadd.f32 %v1154, %v1257
          %v1259 = vpop.f32.mrb[0].mxu0
          %1260 = vmatprep.mubr.bf16.mxu0 0
          %1261 = vmatmul.mubr.bf16.gmra.mrb[0].mxu0 %v1128
          %v1262 = vpop.f32.mrb[0].mxu0
          %v1263 = vadd.f32 %v1154, %v1262
          %v1264 = vpop.f32.mrb[0].mxu0
          %v1265 = vpop.f32.mrb[0].mxu0
          %v1266 = vadd.f32 %v1154, %v1265
          %v1267 = vpop.f32.mrb[0].mxu0
          %1268 = vmatprep.mubr.bf16.mxu0 0
          %1269 = vmatmul.mubr.bf16.gmra.mrb[0].mxu0 %v1129
          %v1270 = vpop.f32.mrb[0].mxu0
          %v1271 = vadd.f32 %v1154, %v1270
          %v1272 = vpop.f32.mrb[0].mxu0
          %v1273 = vpop.f32.mrb[0].mxu0
          %v1274 = vadd.f32 %v1154, %v1273
          %v1275 = vpop.f32.mrb[0].mxu0
          %1276 = vmatprep.mubr.bf16.mxu0 0
          %1277 = vmatmul.mubr.bf16.gmra.mrb[0].mxu0 %v1130
          %v1278 = vpop.f32.mrb[0].mxu0
          %v1279 = vadd.f32 %v1154, %v1278
          %v1280 = vpop.f32.mrb[0].mxu0
          %v1281 = vpop.f32.mrb[0].mxu0
          %v1282 = vadd.f32 %v1154, %v1281
          %v1283 = vpop.f32.mrb[0].mxu0
          %1284 = vmatprep.mubr.bf16.mxu0 0
          %1285 = vmatmul.mubr.bf16.gmra.mrb[0].mxu0 %v1131
          %v1286 = vpop.f32.mrb[0].mxu0
          %v1287 = vadd.f32 %v1154, %v1286
          %v1288 = vpop.f32.mrb[0].mxu0
          %v1289 = vpop.f32.mrb[0].mxu0
          %v1290 = vadd.f32 %v1154, %v1289
          %v1291 = vpop.f32.mrb[0].mxu0
          %1292 = vmatprep.mubr.bf16.mxu0 0
          %1293 = vmatmul.mubr.bf16.gmra.mrb[0].mxu0 %v1132
          %v1294 = vpop.f32.mrb[0].mxu0
          %v1295 = vadd.f32 %v1154, %v1294
          %v1296 = vpop.f32.mrb[0].mxu0
          %v1297 = vpop.f32.mrb[0].mxu0
          %v1298 = vadd.f32 %v1154, %v1297
          %v1299 = vpop.f32.mrb[0].mxu0
          %1300 = vdwg.mxu0
          %v1301 = vld [vmem:[%s352] sm:$0xf]
          %v1302 = vld [vmem:[%s352 + $0x4] sm:$0xf]
          %v1303 = vld [vmem:[%s352 + $0x8] sm:$0xf]
          %v1304 = vld [vmem:[%s352 + $0xc] sm:$0xf]
          %v1305 = vld [vmem:[%s352 + $0x10] sm:$0xf]
          %v1306 = vld [vmem:[%s352 + $0x14] sm:$0xf]
          %v1307 = vld [vmem:[%s352 + $0x18] sm:$0xf]
          %v1308 = vld [vmem:[%s352 + $0x1c] sm:$0xf]
          %v1309 = vld [vmem:[%s352 + $0x20] sm:$0xf]
          %v1310 = vld [vmem:[%s352 + $0x24] sm:$0xf]
          %v1311 = vld [vmem:[%s352 + $0x28] sm:$0xf]
          %v1312 = vld [vmem:[%s352 + $0x2c] sm:$0xf]
          %v1313 = vld [vmem:[%s352 + $0x30] sm:$0xf]
          %v1314 = vld [vmem:[%s352 + $0x34] sm:$0xf]
          %v1315 = vld [vmem:[%s352 + $0x38] sm:$0xf]
          %v1316 = vld [vmem:[%s352 + $0x3c] sm:$0xf]
          %v1317 = vld [vmem:[#allocation9] sm:$0xf]
          %v1318 = vld [vmem:[#allocation9 + $0x4] sm:$0xf]
          %v1319 = vld [vmem:[#allocation9 + $0x8] sm:$0xf]
          %v1320 = vld [vmem:[#allocation9 + $0xc] sm:$0xf]
          %v1321 = vld [vmem:[#allocation9 + $0x10] sm:$0xf]
          %v1322 = vld [vmem:[#allocation9 + $0x14] sm:$0xf]
          %v1323 = vld [vmem:[#allocation9 + $0x18] sm:$0xf]
          %v1324 = vld [vmem:[#allocation9 + $0x1c] sm:$0xf]
          %v1325 = vld [vmem:[#allocation9 + $0x20] sm:$0xf]
          %v1326 = vld [vmem:[#allocation9 + $0x24] sm:$0xf]
          %v1327 = vld [vmem:[#allocation9 + $0x28] sm:$0xf]
          %v1328 = vld [vmem:[#allocation9 + $0x2c] sm:$0xf]
          %v1329 = vld [vmem:[#allocation9 + $0x30] sm:$0xf]
          %v1330 = vld [vmem:[#allocation9 + $0x34] sm:$0xf]
          %v1331 = vld [vmem:[#allocation9 + $0x38] sm:$0xf]
          %v1332 = vld [vmem:[#allocation9 + $0x3c] sm:$0xf]
          %v1349 = vunpack.c.l.b16 %v1301
          %v1350 = vunpack.c.l.b16 %v1302
          %v1351 = vunpack.c.l.b16 %v1303
          %v1352 = vunpack.c.l.b16 %v1304
          %v1353 = vunpack.c.l.b16 %v1305
          %v1354 = vunpack.c.l.b16 %v1306
          %v1355 = vunpack.c.l.b16 %v1307
          %v1356 = vunpack.c.l.b16 %v1308
          %v1357 = vunpack.c.l.b16 %v1309
          %v1358 = vunpack.c.l.b16 %v1310
          %v1359 = vunpack.c.l.b16 %v1311
          %v1360 = vunpack.c.l.b16 %v1312
          %v1361 = vunpack.c.l.b16 %v1313
          %v1362 = vunpack.c.l.b16 %v1314
          %v1363 = vunpack.c.l.b16 %v1315
          %v1364 = vunpack.c.l.b16 %v1316
          %v1365 = vpack.c.b16 %v1350, %v1349
          %v1366 = vpack.c.b16 %v1352, %v1351
          %v1367 = vpack.c.b16 %v1354, %v1353
          %v1368 = vpack.c.b16 %v1356, %v1355
          %v1369 = vpack.c.b16 %v1358, %v1357
          %v1370 = vpack.c.b16 %v1360, %v1359
          %v1371 = vpack.c.b16 %v1362, %v1361
          %v1372 = vpack.c.b16 %v1364, %v1363
          %v1397 = vunpack.c.l.b16 %v1317
          %v1398 = vunpack.c.l.b16 %v1318
          %v1399 = vunpack.c.l.b16 %v1319
          %v1400 = vunpack.c.l.b16 %v1320
          %v1401 = vunpack.c.l.b16 %v1321
          %v1402 = vunpack.c.l.b16 %v1322
          %v1403 = vunpack.c.l.b16 %v1323
          %v1404 = vunpack.c.l.b16 %v1324
          %v1405 = vunpack.c.l.b16 %v1325
          %v1406 = vunpack.c.l.b16 %v1326
          %v1407 = vunpack.c.l.b16 %v1327
          %v1408 = vunpack.c.l.b16 %v1328
          %v1409 = vunpack.c.l.b16 %v1329
          %v1410 = vunpack.c.l.b16 %v1330
          %v1411 = vunpack.c.l.b16 %v1331
          %v1412 = vunpack.c.l.b16 %v1332
          %v1413 = vpack.c.b16 %v1398, %v1397
          %v1414 = vpack.c.b16 %v1400, %v1399
          %v1415 = vpack.c.b16 %v1402, %v1401
          %v1416 = vpack.c.b16 %v1404, %v1403
          %v1417 = vpack.c.b16 %v1406, %v1405
          %v1418 = vpack.c.b16 %v1408, %v1407
          %v1419 = vpack.c.b16 %v1410, %v1409
          %v1420 = vpack.c.b16 %v1412, %v1411
          %1429 = vmatprep.subr.bf16.mxu0 0
          %1430 = vmatpush1.bf16.msra.mxu0 %v1413
          %1431 = vmatprep.subr.bf16.mxu0 0
          %1432 = vmatpush1.bf16.msra.mxu0 %v1414
          %1433 = vmatprep.subr.bf16.mxu0 0
          %1434 = vmatpush1.bf16.msra.mxu0 %v1415
          %1435 = vmatprep.subr.bf16.mxu0 0
          %1436 = vmatpush1.bf16.msra.mxu0 %v1416
          %1437 = vmatprep.subr.bf16.mxu0 0
          %1438 = vmatpush1.bf16.msra.mxu0 %v1417
          %1439 = vmatprep.subr.bf16.mxu0 0
          %1440 = vmatpush1.bf16.msra.mxu0 %v1418
          %1441 = vmatprep.subr.bf16.mxu0 0
          %1442 = vmatpush1.bf16.msra.mxu0 %v1419
          %1443 = vmatprep.subr.bf16.mxu0 0
          %1444 = vmatpush1.bf16.msra.mxu0 %v1420
          %1445 = vmatprep.subr.bf16.mxu0 0
          %1446 = vmatpush1.bf16.msra.mxu0 0
          %1447 = vmatprep.subr.bf16.mxu0 0
          %1448 = vmatpush1.bf16.msra.mxu0 0
          %1449 = vmatprep.subr.bf16.mxu0 0
          %1450 = vmatpush1.bf16.msra.mxu0 0
          %1451 = vmatprep.subr.bf16.mxu0 0
          %1452 = vmatpush1.bf16.msra.mxu0 0
          %1453 = vmatprep.subr.bf16.mxu0 0
          %1454 = vmatpush1.bf16.msra.mxu0 0
          %1455 = vmatprep.subr.bf16.mxu0 0
          %1456 = vmatpush1.bf16.msra.mxu0 0
          %1457 = vmatprep.subr.bf16.mxu0 0
          %1458 = vmatpush1.bf16.msra.mxu0 0
          %1459 = vmatprep.subr.bf16.mxu0 0
          %1460 = vmatpush1.bf16.msra.mxu0 0
          %1461 = vmatprep.mubr.bf16.mxu0 0
          %1462 = vmatmul.mubr.bf16.gmra.mrb[0].mxu0 %v1365
          %v1463 = vpop.f32.mrb[0].mxu0
          %v1464 = vadd.f32 0.0, %v1463
          %v1465 = vpop.f32.mrb[0].mxu0
          %v1466 = vpop.f32.mrb[0].mxu0
          %v1467 = vadd.f32 0.0, %v1466
          %v1468 = vpop.f32.mrb[0].mxu0
          %1469 = vmatprep.mubr.bf16.mxu0 0
          %1470 = vmatmul.mubr.bf16.gmra.mrb[0].mxu0 %v1366
          %v1471 = vpop.f32.mrb[0].mxu0
          %v1472 = vadd.f32 0.0, %v1471
          %v1473 = vpop.f32.mrb[0].mxu0
          %v1474 = vpop.f32.mrb[0].mxu0
          %v1475 = vadd.f32 0.0, %v1474
          %v1476 = vpop.f32.mrb[0].mxu0
          %1477 = vmatprep.mubr.bf16.mxu0 0
          %1478 = vmatmul.mubr.bf16.gmra.mrb[0].mxu0 %v1367
          %v1479 = vpop.f32.mrb[0].mxu0
          %v1480 = vadd.f32 0.0, %v1479
          %v1481 = vpop.f32.mrb[0].mxu0
          %v1482 = vpop.f32.mrb[0].mxu0
          %v1483 = vadd.f32 0.0, %v1482
          %v1484 = vpop.f32.mrb[0].mxu0
          %1485 = vmatprep.mubr.bf16.mxu0 0
          %1486 = vmatmul.mubr.bf16.gmra.mrb[0].mxu0 %v1368
          %v1487 = vpop.f32.mrb[0].mxu0
          %v1488 = vadd.f32 0.0, %v1487
          %v1489 = vpop.f32.mrb[0].mxu0
          %v1490 = vpop.f32.mrb[0].mxu0
          %v1491 = vadd.f32 0.0, %v1490
          %v1492 = vpop.f32.mrb[0].mxu0
          %1493 = vmatprep.mubr.bf16.mxu0 0
          %1494 = vmatmul.mubr.bf16.gmra.mrb[0].mxu0 %v1369
          %v1495 = vpop.f32.mrb[0].mxu0
          %v1496 = vadd.f32 0.0, %v1495
          %v1497 = vpop.f32.mrb[0].mxu0
          %v1498 = vpop.f32.mrb[0].mxu0
          %v1499 = vadd.f32 0.0, %v1498
          %v1500 = vpop.f32.mrb[0].mxu0
          %1501 = vmatprep.mubr.bf16.mxu0 0
          %1502 = vmatmul.mubr.bf16.gmra.mrb[0].mxu0 %v1370
          %v1503 = vpop.f32.mrb[0].mxu0
          %v1504 = vadd.f32 0.0, %v1503
          %v1505 = vpop.f32.mrb[0].mxu0
          %v1506 = vpop.f32.mrb[0].mxu0
          %v1507 = vadd.f32 0.0, %v1506
          %v1508 = vpop.f32.mrb[0].mxu0
          %1509 = vmatprep.mubr.bf16.mxu0 0
          %1510 = vmatmul.mubr.bf16.gmra.mrb[0].mxu0 %v1371
          %v1511 = vpop.f32.mrb[0].mxu0
          %v1512 = vadd.f32 0.0, %v1511
          %v1513 = vpop.f32.mrb[0].mxu0
          %v1514 = vpop.f32.mrb[0].mxu0
          %v1515 = vadd.f32 0.0, %v1514
          %v1516 = vpop.f32.mrb[0].mxu0
          %1517 = vmatprep.mubr.bf16.mxu0 0
          %1518 = vmatmul.mubr.bf16.gmra.mrb[0].mxu0 %v1372
          %v1519 = vpop.f32.mrb[0].mxu0
          %v1520 = vadd.f32 0.0, %v1519
          %v1521 = vpop.f32.mrb[0].mxu0
          %v1522 = vpop.f32.mrb[0].mxu0
          %v1523 = vadd.f32 0.0, %v1522
          %v1524 = vpop.f32.mrb[0].mxu0
          %1525 = vdwg.mxu0
          %v1526 = vadd.f32 %v1239, %v1464
          %v1527 = vadd.f32 %v1242, %v1467
          %v1528 = vadd.f32 %v1247, %v1472
          %v1529 = vadd.f32 %v1250, %v1475
          %v1530 = vadd.f32 %v1255, %v1480
          %v1531 = vadd.f32 %v1258, %v1483
          %v1532 = vadd.f32 %v1263, %v1488
          %v1533 = vadd.f32 %v1266, %v1491
          %v1534 = vadd.f32 %v1271, %v1496
          %v1535 = vadd.f32 %v1274, %v1499
          %v1536 = vadd.f32 %v1279, %v1504
          %v1537 = vadd.f32 %v1282, %v1507
          %v1538 = vadd.f32 %v1287, %v1512
          %v1539 = vadd.f32 %v1290, %v1515
          %v1540 = vadd.f32 %v1295, %v1520
          %v1541 = vadd.f32 %v1298, %v1523
          %v1542 = vmax.f32 %v1526, 0.0
          %v1543 = vmax.f32 %v1527, 0.0
          %v1544 = vmax.f32 %v1528, 0.0
          %v1545 = vmax.f32 %v1529, 0.0
          %v1546 = vmax.f32 %v1530, 0.0
          %v1547 = vmax.f32 %v1531, 0.0
          %v1548 = vmax.f32 %v1532, 0.0
          %v1549 = vmax.f32 %v1533, 0.0
          %v1550 = vmax.f32 %v1534, 0.0
          %v1551 = vmax.f32 %v1535, 0.0
          %v1552 = vmax.f32 %v1536, 0.0
          %v1553 = vmax.f32 %v1537, 0.0
          %v1554 = vmax.f32 %v1538, 0.0
          %v1555 = vmax.f32 %v1539, 0.0
          %v1556 = vmax.f32 %v1540, 0.0
          %v1557 = vmax.f32 %v1541, 0.0
          %v1558 = vpack.c.bf16 %v1543, %v1542
          %v1559 = vpack.c.bf16 %v1545, %v1544
          %v1560 = vpack.c.bf16 %v1547, %v1546
          %v1561 = vpack.c.bf16 %v1549, %v1548
          %v1562 = vpack.c.bf16 %v1551, %v1550
          %v1563 = vpack.c.bf16 %v1553, %v1552
          %v1564 = vpack.c.bf16 %v1555, %v1554
          %v1565 = vpack.c.bf16 %v1557, %v1556
          %v1574 = vunpack.c.l.b16 %v1558
          %v1575 = vunpack.c.h.b16 %v1558
          %v1576 = vunpack.c.l.b16 %v1559
          %v1577 = vunpack.c.h.b16 %v1559
          %v1578 = vunpack.c.l.b16 %v1560
          %v1579 = vunpack.c.h.b16 %v1560
          %v1580 = vunpack.c.l.b16 %v1561
          %v1581 = vunpack.c.h.b16 %v1561
          %v1582 = vunpack.c.l.b16 %v1562
          %v1583 = vunpack.c.h.b16 %v1562
          %v1584 = vunpack.c.l.b16 %v1563
          %v1585 = vunpack.c.h.b16 %v1563
          %v1586 = vunpack.c.l.b16 %v1564
          %v1587 = vunpack.c.h.b16 %v1564
          %v1588 = vunpack.c.l.b16 %v1565
          %v1589 = vunpack.c.h.b16 %v1565
          %v1590 = vpack.c.b16 %v1574, %v1574
          %v1591 = vpack.c.b16 %v1575, %v1575
          %v1592 = vpack.c.b16 %v1576, %v1576
          %v1593 = vpack.c.b16 %v1577, %v1577
          %v1594 = vpack.c.b16 %v1578, %v1578
          %v1595 = vpack.c.b16 %v1579, %v1579
          %v1596 = vpack.c.b16 %v1580, %v1580
          %v1597 = vpack.c.b16 %v1581, %v1581
          %v1598 = vpack.c.b16 %v1582, %v1582
          %v1599 = vpack.c.b16 %v1583, %v1583
          %v1600 = vpack.c.b16 %v1584, %v1584
          %v1601 = vpack.c.b16 %v1585, %v1585
          %v1602 = vpack.c.b16 %v1586, %v1586
          %v1603 = vpack.c.b16 %v1587, %v1587
          %v1604 = vpack.c.b16 %v1588, %v1588
          %v1605 = vpack.c.b16 %v1589, %v1589
          %1622 = vst [vmem:[%s405] sm:$0xf] %v1590
          %1623 = vst [vmem:[%s405 + $0x4] sm:$0xf] %v1591
          %1624 = vst [vmem:[%s405 + $0x8] sm:$0xf] %v1592
          %1625 = vst [vmem:[%s405 + $0xc] sm:$0xf] %v1593
          %1626 = vst [vmem:[%s405 + $0x10] sm:$0xf] %v1594
          %1627 = vst [vmem:[%s405 + $0x14] sm:$0xf] %v1595
          %1628 = vst [vmem:[%s405 + $0x18] sm:$0xf] %v1596
          %1629 = vst [vmem:[%s405 + $0x1c] sm:$0xf] %v1597
          %1630 = vst [vmem:[%s405 + $0x20] sm:$0xf] %v1598
          %1631 = vst [vmem:[%s405 + $0x24] sm:$0xf] %v1599
          %1632 = vst [vmem:[%s405 + $0x28] sm:$0xf] %v1600
          %1633 = vst [vmem:[%s405 + $0x2c] sm:$0xf] %v1601
          %1634 = vst [vmem:[%s405 + $0x30] sm:$0xf] %v1602
          %1635 = vst [vmem:[%s405 + $0x34] sm:$0xf] %v1603
          %1636 = vst [vmem:[%s405 + $0x38] sm:$0xf] %v1604
          %1637 = vst [vmem:[%s405 + $0x3c] sm:$0xf] %v1605
        $region72: #{tpu_custom_call.1} parent=47 // pred_fallthru
          _
        %s1638 = sand.u32 %s215, 1
        %s1639 = scalar_lea.sflag [#allocation5], %s1638
        %s1640 = sand.u32 %s215, 1
        %s1641 = smul.addr %s1640, 64
        %s1642 = scalar_lea.vmem [#allocation11], %s1641
        // Predicated region
        $region73: #{tpu_custom_call.1} parent=47 // pred_check
          %p1643 = pneg %p225
        $region74: #{tpu_custom_call.1} parent=47 // pred_check_branch
          %1645 = sbr.rel (%p1643) target = $region76
        $region75: #{tpu_custom_call.1} parent=47 // pred_region
          %s1646 = smul.u32 16, %s30
          %s1648 = ssub.s32 1024, 1024
          %1649 = vsyncadd %s1639, %s1648
          %s1650 = smul.addr %s1646, 64
          %s1651 = scalar_lea.hbm %s7, %s1650
          %s1652 = sshll.u32 %s1642, 4
          %s1653 = int_to_ptr.vmem [resolvable:$true] %s1652
          %1658 = dma.vmem_to_hbm [thread:$0]  %s1653, 1024, %s1651, %s1639, 64, 64, 4
        $region76: #{tpu_custom_call.1} parent=47 // pred_fallthru
          _
      $region48: #{tpu_custom_call.1} parent=5 // pred_fallthru
        _
      %p1659 = scmp.le.s32.totalorder 2, %s21
      // Predicated region
      $region77: #{tpu_custom_call.1} parent=5 // pred_check
        %p1660 = pneg %p1659
      $region78: #{tpu_custom_call.1} parent=5 // pred_check_branch
        %1662 = sbr.rel (%p1660) target = $region80
      $region79: #{tpu_custom_call.1} parent=5 // pred_region
        %s1663 = ssub.s32 %s21, 2
        // Predicated region
        $region81: #{tpu_custom_call.1} parent=79 // pred_check
          %p1664 = pneg %p231
        $region82: #{tpu_custom_call.1} parent=79 // pred_check_branch
          %1666 = sbr.rel (%p1664) target = $region84
        $region83: #{tpu_custom_call.1} parent=79 // pred_region
          %s1667 = sand.u32 %s216, 1
          %s1668 = scalar_lea.sflag [#allocation5], %s1667
          %s1669 = sand.u32 %s216, 1
          %s1670 = smul.addr %s1669, 64
          %s1671 = scalar_lea.vmem [#allocation11], %s1670
          %1672 = dma.done %s1668, 1024
        $region84: #{tpu_custom_call.1} parent=79 // pred_fallthru
          _
      $region80: #{tpu_custom_call.1} parent=5 // pred_fallthru
        _
    $region6: #{tpu_custom_call.1} parent=1 // loop_footer
      %s25 = sadd.s32 1, %s21
    $region7: #{tpu_custom_call.1} parent=1 // loop_footer_branch
      %20 = sbr.rel target = $region3
    $region8: #{tpu_custom_call.1} parent=1 // loop_exit
      _
    %1673 = vsyncpa [#allocation4], 1
    %s1674 = scalar_lea.sflag [#allocation4], 1
    %1675 = vsyncpa %s1674, 1
    %1676 = vsyncpa [#allocation7], 1
    %s1677 = scalar_lea.sflag [#allocation7], 1
    %1678 = vsyncpa %s1677, 1
    %1679 = vsyncpa [#allocation10], 1
    %1680 = vsyncpa [#allocation5], 1
    %s1681 = scalar_lea.sflag [#allocation5], 1
    %1682 = vsyncpa %s1681, 1

</llo_original>
